<compile_context>
chip_gen: v6e
topology: v6e:2x2x1
jax: 0.10.0
libtpu: 0.0.40
codegen_flags: <defaults>
</compile_context>

<pallas_src>
import math
from functools import partial

import jax
import jax.numpy as jnp
from jax.experimental import pallas as pl
from jax.experimental.pallas import tpu as pltpu


def _round_up(n, m):
    return ((n + m - 1) // m) * m


# ----------------------------------------------------------------------------
# Fused Pallas kernel: LSTM layer 0 over the full sequence + linear head,
# for one block of (independent) batch rows.
# ----------------------------------------------------------------------------
def _fused_lstm_head_kernel(x_ref, wih_ref, whh_ref, b_ref, wlin_ref, blin_ref,
                            out_ref, *, hidden):
    """
    x_ref:    (BB, T, F)   natural batch-major input block (BB multiple of 8)
    wih_ref:  (F, 4H)      W_ih^T, gate columns permuted to [i, f, o, g]
    whh_ref:  (H, 4H)      W_hh^T, same permutation
    b_ref:    (1, 4H)      b_ih + b_hh, same permutation
    wlin_ref: (1, H)       linear weight row (out_features == 1)
    blin_ref: (1, 1)       linear bias
    out_ref:  (BB, 1)
    """
    BB, T, F = x_ref.shape
    H = hidden

    # Hoisted input projection: one MXU matmul with M = BB*T instead of T tiny
    # per-step matmuls; it does not depend on h, so it is off the serial
    # recurrence path.  Relayout-free reshapes (leading <-> sublane merges).
    x2 = x_ref[...].reshape(BB * T, F)                                 # (BB*T, F)
    gx = (jnp.dot(x2, wih_ref[...], preferred_element_type=jnp.float32)
          + b_ref[...]).reshape(BB, T, 4 * H)                          # (BB, T, 4H)

    whh = whh_ref[...]
    h = jnp.zeros((BB, H), jnp.float32)
    c = jnp.zeros((BB, H), jnp.float32)

    # T is small and static -> fully unrolled recurrence with static slices.
    # Gate columns are pre-permuted to [i, f, o, g]: 3 EUP passes per step.
    for t in range(T):
        gates = gx[:, t, :] + jnp.dot(h, whh,
                                      preferred_element_type=jnp.float32)  # (BB, 4H)
        sig = jax.nn.sigmoid(gates[:, :3 * H])      # i | f | o in one pass
        g_g = jnp.tanh(gates[:, 3 * H:])            # g
        i_g = sig[:, 0 * H:1 * H]
        f_g = sig[:, 1 * H:2 * H]
        o_g = sig[:, 2 * H:3 * H]
        c = f_g * c + i_g * g_g
        h = o_g * jnp.tanh(c)

    # Fused linear head (single output feature): VPU multiply + lane reduce.
    out_ref[...] = (jnp.sum(h * wlin_ref[...], axis=-1, keepdims=True)
                    + blin_ref[...])


# ----------------------------------------------------------------------------
# Wrapper
# ----------------------------------------------------------------------------
def shallow_regression_lstm_forward(x_btf, kparams, *, block_batch=8):
    """x_btf: (B, T, num_sensors) -> (B,), matching the PyTorch forward.

    Only LSTM layer 0 is computed: the model's output is linear(hn[0]) where
    hn[0] is the FIRST layer's final hidden state, so deeper layers are dead
    compute and are skipped (output-identical; checked against the reference).
    """
    B, T, F = x_btf.shape
    w_ih_t = kparams["w_ih_t"]
    w_hh_t = kparams["w_hh_t"]
    bias_row = kparams["bias_row"]
    w_lin_row = kparams["w_lin_row"]
    b_lin = kparams["b_lin"]
    H = w_hh_t.shape[0]

    BB = block_batch                                  # sublane-aligned block
    Bp = _round_up(max(B, BB), BB)
    # Zero-pad the batch dim only (no HBM transpose copy).  Padded rows are
    # independent, stay finite (zero inputs), and are sliced off below.
    x_pad = jnp.pad(x_btf.astype(jnp.float32), ((0, Bp - B), (0, 0), (0, 0)))
    n_blocks = Bp // BB

    kernel = partial(_fused_lstm_head_kernel, hidden=H)

    cost = pl.CostEstimate(
        flops=int(2 * Bp * T * F * 4 * H          # input projection
                  + 2 * Bp * T * H * 4 * H        # recurrent matmuls
                  + 10 * Bp * T * H               # gate/cell VPU math (rough)
                  + 2 * Bp * H),                  # head
        transcendentals=int(Bp * T * 5 * H),
        bytes_accessed=int(4 * (Bp * T * F + F * 4 * H + H * 4 * H + 4 * H
                                + H + 1 + Bp)),
    )

    out = pl.pallas_call(
        kernel,
        grid=(n_blocks,),
        in_specs=[
            pl.BlockSpec((BB, T, F), lambda i: (i, 0, 0)),       # x block
            pl.BlockSpec(w_ih_t.shape, lambda i: (0, 0)),        # W_ih^T
            pl.BlockSpec(w_hh_t.shape, lambda i: (0, 0)),        # W_hh^T
            pl.BlockSpec(bias_row.shape, lambda i: (0, 0)),      # fused bias
            pl.BlockSpec(w_lin_row.shape, lambda i: (0, 0)),     # head weight
            pl.BlockSpec(b_lin.shape, lambda i: (0, 0)),         # head bias
        ],
        out_specs=pl.BlockSpec((BB, 1), lambda i: (i, 0)),
        out_shape=jax.ShapeDtypeStruct((Bp, 1), jnp.float32),
        compiler_params=pltpu.CompilerParams(
            dimension_semantics=("parallel",)),                  # v7x 2-TC
        cost_estimate=cost,
    )(x_pad, w_ih_t, w_hh_t, bias_row, w_lin_row, b_lin)
    return out[:B, 0]                                            # .flatten()


# ----------------------------------------------------------------------------
# Deterministic parameter construction (PyTorch default init: U(-k, k)),
# raw PyTorch layout / gate order [i, f, g, o], all layers.
# ----------------------------------------------------------------------------
def init_params(key, num_sensors, hidden_units, num_layers):
    H = hidden_units
    k = 1.0 / math.sqrt(H)
    layers = []
    for layer in range(num_layers):
        in_f = num_sensors if layer == 0 else H
        key, k1, k2, k3, k4 = jax.random.split(key, 5)
        w_ih = jax.random.uniform(k1, (4 * H, in_f), jnp.float32, -k, k)
        w_hh = jax.random.uniform(k2, (4 * H, H), jnp.float32, -k, k)
        b_ih = jax.random.uniform(k3, (4 * H,), jnp.float32, -k, k)
        b_hh = jax.random.uniform(k4, (4 * H,), jnp.float32, -k, k)
        layers.append((w_ih, w_hh, b_ih, b_hh))
    key, k1, k2 = jax.random.split(key, 3)
    w_lin = jax.random.uniform(k1, (1, H), jnp.float32, -k, k)
    b_lin = jax.random.uniform(k2, (1,), jnp.float32, -k, k)
    return {"lstm_layers": layers, "w_lin": w_lin, "b_lin": b_lin}


def prepare_kernel_params(raw):
    """Kernel-ready params (layer 0 only, since the head reads hn[0]).

    Gate blocks are permuted from PyTorch order [i, f, g, o] to [i, f, o, g]
    so the kernel can do one sigmoid over columns [:3H] and one tanh over
    [3H:].  W_ih, W_hh and the fused bias are all permuted consistently.
    """
    w_ih, w_hh, b_ih, b_hh = raw["lstm_layers"][0]
    H = w_hh.shape[1]
    perm = jnp.concatenate([jnp.arange(0, 2 * H),        # i, f
                            jnp.arange(3 * H, 4 * H),    # o
                            jnp.arange(2 * H, 3 * H)])   # g
    return {
        "w_ih_t": jnp.transpose(w_ih[perm, :]),            # (F, 4H)
        "w_hh_t": jnp.transpose(w_hh[perm, :]),            # (H, 4H)
        "bias_row": (b_ih + b_hh)[perm].reshape(1, 4 * H),  # (1, 4H)
        "w_lin_row": raw["w_lin"],                          # (1, H)
        "b_lin": raw["b_lin"].reshape(1, 1),                # (1, 1)
    }


# ----------------------------------------------------------------------------
# Pure-JAX reference: runs ALL LSTM layers exactly like PyTorch (raw params,
# PyTorch gate order), then takes hn[0] -> linear.  Verifies both the
# dead-layer elimination and the gate-column permutation are output-identical.
# ----------------------------------------------------------------------------
def reference_forward(x_btf, raw):
    x_tbf = jnp.transpose(x_btf, (1, 0, 2)).astype(jnp.float32)
    B = x_btf.shape[0]
    hn0 = None
    layer_in = x_tbf
    for k_layer, (w_ih, w_hh, b_ih, b_hh) in enumerate(raw["lstm_layers"]):
        H = w_hh.shape[1]
        w_ih_t, w_hh_t, bias = w_ih.T, w_hh.T, b_ih + b_hh

        def step(carry, x_t, w_ih_t=w_ih_t, w_hh_t=w_hh_t, bias=bias, H=H):
            h, c = carry
            gates = x_t @ w_ih_t + h @ w_hh_t + bias
            i_g = jax.nn.sigmoid(gates[:, 0 * H:1 * H])
            f_g = jax.nn.sigmoid(gates[:, 1 * H:2 * H])
            g_g = jnp.tanh(gates[:, 2 * H:3 * H])
            o_g = jax.nn.sigmoid(gates[:, 3 * H:4 * H])
            c_n = f_g * c + i_g * g_g
            h_n = o_g * jnp.tanh(c_n)
            return (h_n, c_n), h_n

        h0 = jnp.zeros((B, H), jnp.float32)
        (_, _), h_seq = jax.lax.scan(step, (h0, h0), layer_in)
        if k_layer == 0:
            hn0 = h_seq[-1]
        layer_in = h_seq
    return (hn0 * raw["w_lin"]).sum(-1) + raw["b_lin"][0]


# ----------------------------------------------------------------------------
if __name__ == "__main__":
    num_sensors, hidden_units, num_layers = 4, 32, 2
    batch, seq_len = 2, 8

    key = jax.random.PRNGKey(0)
    key, kx, kp = jax.random.split(key, 3)
    x = jax.random.normal(kx, (batch, seq_len, num_sensors), jnp.float32)
    raw_params = init_params(kp, num_sensors, hidden_units, num_layers)
    kparams = prepare_kernel_params(raw_params)

    out = shallow_regression_lstm_forward(x, kparams)
    out = jax.block_until_ready(out)

    ref = reference_forward(x, raw_params)
    assert out.shape == (batch,), out.shape
    assert jnp.allclose(out, ref, atol=1e-5, rtol=1e-5), (out, ref)

    print("KERNEL_OK")
</pallas_src>

<mosaic_0001>
module attributes {stable_mosaic.version = 11 : i64} {
  func.func @_fused_lstm_head_kernel(%arg0: i32, %arg1: memref<8x8x4xf32, #tpu.memory_space<vmem>>, %arg2: memref<4x128xf32, #tpu.memory_space<vmem>>, %arg3: memref<32x128xf32, #tpu.memory_space<vmem>>, %arg4: memref<1x128xf32, #tpu.memory_space<vmem>>, %arg5: memref<1x32xf32, #tpu.memory_space<vmem>>, %arg6: memref<1x1xf32, #tpu.memory_space<vmem>>, %arg7: memref<8x1xf32, #tpu.memory_space<vmem>>) attributes {dimension_semantics = [#tpu.dimension_semantics<parallel>], iteration_bounds = array<i64: 1>, scalar_prefetch = 0 : i64, scratch_operands = 0 : i64, tpu.core_type = #tpu.core_type<tc>, window_params = [{transform_indices = @transform_0, window_bounds = array<i64: 8, 8, 4>}, {pipeline_mode = #tpu.pipeline_mode<synchronous>, transform_indices = @transform_1, window_bounds = array<i64: 4, 128>}, {pipeline_mode = #tpu.pipeline_mode<synchronous>, transform_indices = @transform_2, window_bounds = array<i64: 32, 128>}, {pipeline_mode = #tpu.pipeline_mode<synchronous>, transform_indices = @transform_3, window_bounds = array<i64: 1, 128>}, {pipeline_mode = #tpu.pipeline_mode<synchronous>, transform_indices = @transform_4, window_bounds = array<i64: 1, 32>}, {pipeline_mode = #tpu.pipeline_mode<synchronous>, transform_indices = @transform_5, window_bounds = array<i64: 1, 1>}, {transform_indices = @transform_6, window_bounds = array<i64: 8, 1>}]} {
    %c0 = arith.constant 0 : index
    %c0_0 = arith.constant 0 : index
    %c0_1 = arith.constant 0 : index
    %0 = vector.load %arg1[%c0, %c0_0, %c0_1] : memref<8x8x4xf32, #tpu.memory_space<vmem>>, vector<8x8x4xf32>
    %1 = vector.shape_cast %0 : vector<8x8x4xf32> to vector<64x4xf32>
    %c0_2 = arith.constant 0 : index
    %c0_3 = arith.constant 0 : index
    %2 = vector.load %arg2[%c0_2, %c0_3] : memref<4x128xf32, #tpu.memory_space<vmem>>, vector<4x128xf32>
    %cst = arith.constant dense<0.000000e+00> : vector<64x128xf32>
    %3 = tpu.matmul %1, %2, %cst {dimension_numbers = #tpu.dot_dimension_numbers<[1], [0], [0], [1], [0, 0, 1, 1], [], []>} : vector<64x4xf32>, vector<4x128xf32>, vector<64x128xf32> -> vector<64x128xf32>
    %c0_4 = arith.constant 0 : index
    %c0_5 = arith.constant 0 : index
    %4 = vector.load %arg4[%c0_4, %c0_5] : memref<1x128xf32, #tpu.memory_space<vmem>>, vector<1x128xf32>
    %5 = vector.broadcast %4 : vector<1x128xf32> to vector<64x128xf32>
    %6 = arith.addf %3, %5 : vector<64x128xf32>
    %7 = vector.shape_cast %6 : vector<64x128xf32> to vector<8x8x128xf32>
    %c0_6 = arith.constant 0 : index
    %c0_7 = arith.constant 0 : index
    %8 = vector.load %arg3[%c0_6, %c0_7] : memref<32x128xf32, #tpu.memory_space<vmem>>, vector<32x128xf32>
    %cst_8 = arith.constant 0.000000e+00 : f32
    %9 = vector.broadcast %cst_8 : f32 to vector<8x32xf32>
    %cst_9 = arith.constant 0.000000e+00 : f32
    %10 = vector.broadcast %cst_9 : f32 to vector<8x32xf32>
    %11 = vector.extract_strided_slice %7 {offsets = [0, 0, 0], sizes = [8, 1, 128], strides = [1, 1, 1]} : vector<8x8x128xf32> to vector<8x1x128xf32>
    %12 = vector.shape_cast %11 : vector<8x1x128xf32> to vector<8x128xf32>
    %cst_10 = arith.constant dense<0.000000e+00> : vector<8x128xf32>
    %13 = tpu.matmul %9, %8, %cst_10 {dimension_numbers = #tpu.dot_dimension_numbers<[1], [0], [0], [1], [0, 0, 1, 1], [], []>} : vector<8x32xf32>, vector<32x128xf32>, vector<8x128xf32> -> vector<8x128xf32>
    %14 = arith.addf %12, %13 : vector<8x128xf32>
    %15 = vector.extract_strided_slice %14 {offsets = [0, 0], sizes = [8, 96], strides = [1, 1]} : vector<8x128xf32> to vector<8x96xf32>
    %16 = arith.negf %15 : vector<8x96xf32>
    %17 = math.exp %16 : vector<8x96xf32>
    %cst_11 = arith.constant 1.000000e+00 : f32
    %18 = vector.broadcast %cst_11 : f32 to vector<8x96xf32>
    %19 = arith.addf %18, %17 : vector<8x96xf32>
    %20 = arith.divf %18, %19 : vector<8x96xf32>
    %21 = vector.extract_strided_slice %14 {offsets = [0, 96], sizes = [8, 32], strides = [1, 1]} : vector<8x128xf32> to vector<8x32xf32>
    %22 = math.tanh %21 : vector<8x32xf32>
    %23 = vector.extract_strided_slice %20 {offsets = [0, 0], sizes = [8, 32], strides = [1, 1]} : vector<8x96xf32> to vector<8x32xf32>
    %24 = vector.extract_strided_slice %20 {offsets = [0, 32], sizes = [8, 32], strides = [1, 1]} : vector<8x96xf32> to vector<8x32xf32>
    %25 = vector.extract_strided_slice %20 {offsets = [0, 64], sizes = [8, 32], strides = [1, 1]} : vector<8x96xf32> to vector<8x32xf32>
    %26 = arith.mulf %24, %10 : vector<8x32xf32>
    %27 = arith.mulf %23, %22 : vector<8x32xf32>
    %28 = arith.addf %26, %27 : vector<8x32xf32>
    %29 = math.tanh %28 : vector<8x32xf32>
    %30 = arith.mulf %25, %29 : vector<8x32xf32>
    %31 = vector.extract_strided_slice %7 {offsets = [0, 1, 0], sizes = [8, 1, 128], strides = [1, 1, 1]} : vector<8x8x128xf32> to vector<8x1x128xf32>
    %32 = vector.shape_cast %31 : vector<8x1x128xf32> to vector<8x128xf32>
    %cst_12 = arith.constant dense<0.000000e+00> : vector<8x128xf32>
    %33 = tpu.matmul %30, %8, %cst_12 {dimension_numbers = #tpu.dot_dimension_numbers<[1], [0], [0], [1], [0, 0, 1, 1], [], []>} : vector<8x32xf32>, vector<32x128xf32>, vector<8x128xf32> -> vector<8x128xf32>
    %34 = arith.addf %32, %33 : vector<8x128xf32>
    %35 = vector.extract_strided_slice %34 {offsets = [0, 0], sizes = [8, 96], strides = [1, 1]} : vector<8x128xf32> to vector<8x96xf32>
    %36 = arith.negf %35 : vector<8x96xf32>
    %37 = math.exp %36 : vector<8x96xf32>
    %cst_13 = arith.constant 1.000000e+00 : f32
    %38 = vector.broadcast %cst_13 : f32 to vector<8x96xf32>
    %39 = arith.addf %38, %37 : vector<8x96xf32>
    %40 = arith.divf %38, %39 : vector<8x96xf32>
    %41 = vector.extract_strided_slice %34 {offsets = [0, 96], sizes = [8, 32], strides = [1, 1]} : vector<8x128xf32> to vector<8x32xf32>
    %42 = math.tanh %41 : vector<8x32xf32>
    %43 = vector.extract_strided_slice %40 {offsets = [0, 0], sizes = [8, 32], strides = [1, 1]} : vector<8x96xf32> to vector<8x32xf32>
    %44 = vector.extract_strided_slice %40 {offsets = [0, 32], sizes = [8, 32], strides = [1, 1]} : vector<8x96xf32> to vector<8x32xf32>
    %45 = vector.extract_strided_slice %40 {offsets = [0, 64], sizes = [8, 32], strides = [1, 1]} : vector<8x96xf32> to vector<8x32xf32>
    %46 = arith.mulf %44, %28 : vector<8x32xf32>
    %47 = arith.mulf %43, %42 : vector<8x32xf32>
    %48 = arith.addf %46, %47 : vector<8x32xf32>
    %49 = math.tanh %48 : vector<8x32xf32>
    %50 = arith.mulf %45, %49 : vector<8x32xf32>
    %51 = vector.extract_strided_slice %7 {offsets = [0, 2, 0], sizes = [8, 1, 128], strides = [1, 1, 1]} : vector<8x8x128xf32> to vector<8x1x128xf32>
    %52 = vector.shape_cast %51 : vector<8x1x128xf32> to vector<8x128xf32>
    %cst_14 = arith.constant dense<0.000000e+00> : vector<8x128xf32>
    %53 = tpu.matmul %50, %8, %cst_14 {dimension_numbers = #tpu.dot_dimension_numbers<[1], [0], [0], [1], [0, 0, 1, 1], [], []>} : vector<8x32xf32>, vector<32x128xf32>, vector<8x128xf32> -> vector<8x128xf32>
    %54 = arith.addf %52, %53 : vector<8x128xf32>
    %55 = vector.extract_strided_slice %54 {offsets = [0, 0], sizes = [8, 96], strides = [1, 1]} : vector<8x128xf32> to vector<8x96xf32>
    %56 = arith.negf %55 : vector<8x96xf32>
    %57 = math.exp %56 : vector<8x96xf32>
    %cst_15 = arith.constant 1.000000e+00 : f32
    %58 = vector.broadcast %cst_15 : f32 to vector<8x96xf32>
    %59 = arith.addf %58, %57 : vector<8x96xf32>
    %60 = arith.divf %58, %59 : vector<8x96xf32>
    %61 = vector.extract_strided_slice %54 {offsets = [0, 96], sizes = [8, 32], strides = [1, 1]} : vector<8x128xf32> to vector<8x32xf32>
    %62 = math.tanh %61 : vector<8x32xf32>
    %63 = vector.extract_strided_slice %60 {offsets = [0, 0], sizes = [8, 32], strides = [1, 1]} : vector<8x96xf32> to vector<8x32xf32>
    %64 = vector.extract_strided_slice %60 {offsets = [0, 32], sizes = [8, 32], strides = [1, 1]} : vector<8x96xf32> to vector<8x32xf32>
    %65 = vector.extract_strided_slice %60 {offsets = [0, 64], sizes = [8, 32], strides = [1, 1]} : vector<8x96xf32> to vector<8x32xf32>
    %66 = arith.mulf %64, %48 : vector<8x32xf32>
    %67 = arith.mulf %63, %62 : vector<8x32xf32>
    %68 = arith.addf %66, %67 : vector<8x32xf32>
    %69 = math.tanh %68 : vector<8x32xf32>
    %70 = arith.mulf %65, %69 : vector<8x32xf32>
    %71 = vector.extract_strided_slice %7 {offsets = [0, 3, 0], sizes = [8, 1, 128], strides = [1, 1, 1]} : vector<8x8x128xf32> to vector<8x1x128xf32>
    %72 = vector.shape_cast %71 : vector<8x1x128xf32> to vector<8x128xf32>
    %cst_16 = arith.constant dense<0.000000e+00> : vector<8x128xf32>
    %73 = tpu.matmul %70, %8, %cst_16 {dimension_numbers = #tpu.dot_dimension_numbers<[1], [0], [0], [1], [0, 0, 1, 1], [], []>} : vector<8x32xf32>, vector<32x128xf32>, vector<8x128xf32> -> vector<8x128xf32>
    %74 = arith.addf %72, %73 : vector<8x128xf32>
    %75 = vector.extract_strided_slice %74 {offsets = [0, 0], sizes = [8, 96], strides = [1, 1]} : vector<8x128xf32> to vector<8x96xf32>
    %76 = arith.negf %75 : vector<8x96xf32>
    %77 = math.exp %76 : vector<8x96xf32>
    %cst_17 = arith.constant 1.000000e+00 : f32
    %78 = vector.broadcast %cst_17 : f32 to vector<8x96xf32>
    %79 = arith.addf %78, %77 : vector<8x96xf32>
    %80 = arith.divf %78, %79 : vector<8x96xf32>
    %81 = vector.extract_strided_slice %74 {offsets = [0, 96], sizes = [8, 32], strides = [1, 1]} : vector<8x128xf32> to vector<8x32xf32>
    %82 = math.tanh %81 : vector<8x32xf32>
    %83 = vector.extract_strided_slice %80 {offsets = [0, 0], sizes = [8, 32], strides = [1, 1]} : vector<8x96xf32> to vector<8x32xf32>
    %84 = vector.extract_strided_slice %80 {offsets = [0, 32], sizes = [8, 32], strides = [1, 1]} : vector<8x96xf32> to vector<8x32xf32>
    %85 = vector.extract_strided_slice %80 {offsets = [0, 64], sizes = [8, 32], strides = [1, 1]} : vector<8x96xf32> to vector<8x32xf32>
    %86 = arith.mulf %84, %68 : vector<8x32xf32>
    %87 = arith.mulf %83, %82 : vector<8x32xf32>
    %88 = arith.addf %86, %87 : vector<8x32xf32>
    %89 = math.tanh %88 : vector<8x32xf32>
    %90 = arith.mulf %85, %89 : vector<8x32xf32>
    %91 = vector.extract_strided_slice %7 {offsets = [0, 4, 0], sizes = [8, 1, 128], strides = [1, 1, 1]} : vector<8x8x128xf32> to vector<8x1x128xf32>
    %92 = vector.shape_cast %91 : vector<8x1x128xf32> to vector<8x128xf32>
    %cst_18 = arith.constant dense<0.000000e+00> : vector<8x128xf32>
    %93 = tpu.matmul %90, %8, %cst_18 {dimension_numbers = #tpu.dot_dimension_numbers<[1], [0], [0], [1], [0, 0, 1, 1], [], []>} : vector<8x32xf32>, vector<32x128xf32>, vector<8x128xf32> -> vector<8x128xf32>
    %94 = arith.addf %92, %93 : vector<8x128xf32>
    %95 = vector.extract_strided_slice %94 {offsets = [0, 0], sizes = [8, 96], strides = [1, 1]} : vector<8x128xf32> to vector<8x96xf32>
    %96 = arith.negf %95 : vector<8x96xf32>
    %97 = math.exp %96 : vector<8x96xf32>
    %cst_19 = arith.constant 1.000000e+00 : f32
    %98 = vector.broadcast %cst_19 : f32 to vector<8x96xf32>
    %99 = arith.addf %98, %97 : vector<8x96xf32>
    %100 = arith.divf %98, %99 : vector<8x96xf32>
    %101 = vector.extract_strided_slice %94 {offsets = [0, 96], sizes = [8, 32], strides = [1, 1]} : vector<8x128xf32> to vector<8x32xf32>
    %102 = math.tanh %101 : vector<8x32xf32>
    %103 = vector.extract_strided_slice %100 {offsets = [0, 0], sizes = [8, 32], strides = [1, 1]} : vector<8x96xf32> to vector<8x32xf32>
    %104 = vector.extract_strided_slice %100 {offsets = [0, 32], sizes = [8, 32], strides = [1, 1]} : vector<8x96xf32> to vector<8x32xf32>
    %105 = vector.extract_strided_slice %100 {offsets = [0, 64], sizes = [8, 32], strides = [1, 1]} : vector<8x96xf32> to vector<8x32xf32>
    %106 = arith.mulf %104, %88 : vector<8x32xf32>
    %107 = arith.mulf %103, %102 : vector<8x32xf32>
    %108 = arith.addf %106, %107 : vector<8x32xf32>
    %109 = math.tanh %108 : vector<8x32xf32>
    %110 = arith.mulf %105, %109 : vector<8x32xf32>
    %111 = vector.extract_strided_slice %7 {offsets = [0, 5, 0], sizes = [8, 1, 128], strides = [1, 1, 1]} : vector<8x8x128xf32> to vector<8x1x128xf32>
    %112 = vector.shape_cast %111 : vector<8x1x128xf32> to vector<8x128xf32>
    %cst_20 = arith.constant dense<0.000000e+00> : vector<8x128xf32>
    %113 = tpu.matmul %110, %8, %cst_20 {dimension_numbers = #tpu.dot_dimension_numbers<[1], [0], [0], [1], [0, 0, 1, 1], [], []>} : vector<8x32xf32>, vector<32x128xf32>, vector<8x128xf32> -> vector<8x128xf32>
    %114 = arith.addf %112, %113 : vector<8x128xf32>
    %115 = vector.extract_strided_slice %114 {offsets = [0, 0], sizes = [8, 96], strides = [1, 1]} : vector<8x128xf32> to vector<8x96xf32>
    %116 = arith.negf %115 : vector<8x96xf32>
    %117 = math.exp %116 : vector<8x96xf32>
    %cst_21 = arith.constant 1.000000e+00 : f32
    %118 = vector.broadcast %cst_21 : f32 to vector<8x96xf32>
    %119 = arith.addf %118, %117 : vector<8x96xf32>
    %120 = arith.divf %118, %119 : vector<8x96xf32>
    %121 = vector.extract_strided_slice %114 {offsets = [0, 96], sizes = [8, 32], strides = [1, 1]} : vector<8x128xf32> to vector<8x32xf32>
    %122 = math.tanh %121 : vector<8x32xf32>
    %123 = vector.extract_strided_slice %120 {offsets = [0, 0], sizes = [8, 32], strides = [1, 1]} : vector<8x96xf32> to vector<8x32xf32>
    %124 = vector.extract_strided_slice %120 {offsets = [0, 32], sizes = [8, 32], strides = [1, 1]} : vector<8x96xf32> to vector<8x32xf32>
    %125 = vector.extract_strided_slice %120 {offsets = [0, 64], sizes = [8, 32], strides = [1, 1]} : vector<8x96xf32> to vector<8x32xf32>
    %126 = arith.mulf %124, %108 : vector<8x32xf32>
    %127 = arith.mulf %123, %122 : vector<8x32xf32>
    %128 = arith.addf %126, %127 : vector<8x32xf32>
    %129 = math.tanh %128 : vector<8x32xf32>
    %130 = arith.mulf %125, %129 : vector<8x32xf32>
    %131 = vector.extract_strided_slice %7 {offsets = [0, 6, 0], sizes = [8, 1, 128], strides = [1, 1, 1]} : vector<8x8x128xf32> to vector<8x1x128xf32>
    %132 = vector.shape_cast %131 : vector<8x1x128xf32> to vector<8x128xf32>
    %cst_22 = arith.constant dense<0.000000e+00> : vector<8x128xf32>
    %133 = tpu.matmul %130, %8, %cst_22 {dimension_numbers = #tpu.dot_dimension_numbers<[1], [0], [0], [1], [0, 0, 1, 1], [], []>} : vector<8x32xf32>, vector<32x128xf32>, vector<8x128xf32> -> vector<8x128xf32>
    %134 = arith.addf %132, %133 : vector<8x128xf32>
    %135 = vector.extract_strided_slice %134 {offsets = [0, 0], sizes = [8, 96], strides = [1, 1]} : vector<8x128xf32> to vector<8x96xf32>
    %136 = arith.negf %135 : vector<8x96xf32>
    %137 = math.exp %136 : vector<8x96xf32>
    %cst_23 = arith.constant 1.000000e+00 : f32
    %138 = vector.broadcast %cst_23 : f32 to vector<8x96xf32>
    %139 = arith.addf %138, %137 : vector<8x96xf32>
    %140 = arith.divf %138, %139 : vector<8x96xf32>
    %141 = vector.extract_strided_slice %134 {offsets = [0, 96], sizes = [8, 32], strides = [1, 1]} : vector<8x128xf32> to vector<8x32xf32>
    %142 = math.tanh %141 : vector<8x32xf32>
    %143 = vector.extract_strided_slice %140 {offsets = [0, 0], sizes = [8, 32], strides = [1, 1]} : vector<8x96xf32> to vector<8x32xf32>
    %144 = vector.extract_strided_slice %140 {offsets = [0, 32], sizes = [8, 32], strides = [1, 1]} : vector<8x96xf32> to vector<8x32xf32>
    %145 = vector.extract_strided_slice %140 {offsets = [0, 64], sizes = [8, 32], strides = [1, 1]} : vector<8x96xf32> to vector<8x32xf32>
    %146 = arith.mulf %144, %128 : vector<8x32xf32>
    %147 = arith.mulf %143, %142 : vector<8x32xf32>
    %148 = arith.addf %146, %147 : vector<8x32xf32>
    %149 = math.tanh %148 : vector<8x32xf32>
    %150 = arith.mulf %145, %149 : vector<8x32xf32>
    %151 = vector.extract_strided_slice %7 {offsets = [0, 7, 0], sizes = [8, 1, 128], strides = [1, 1, 1]} : vector<8x8x128xf32> to vector<8x1x128xf32>
    %152 = vector.shape_cast %151 : vector<8x1x128xf32> to vector<8x128xf32>
    %cst_24 = arith.constant dense<0.000000e+00> : vector<8x128xf32>
    %153 = tpu.matmul %150, %8, %cst_24 {dimension_numbers = #tpu.dot_dimension_numbers<[1], [0], [0], [1], [0, 0, 1, 1], [], []>} : vector<8x32xf32>, vector<32x128xf32>, vector<8x128xf32> -> vector<8x128xf32>
    %154 = arith.addf %152, %153 : vector<8x128xf32>
    %155 = vector.extract_strided_slice %154 {offsets = [0, 0], sizes = [8, 96], strides = [1, 1]} : vector<8x128xf32> to vector<8x96xf32>
    %156 = arith.negf %155 : vector<8x96xf32>
    %157 = math.exp %156 : vector<8x96xf32>
    %cst_25 = arith.constant 1.000000e+00 : f32
    %158 = vector.broadcast %cst_25 : f32 to vector<8x96xf32>
    %159 = arith.addf %158, %157 : vector<8x96xf32>
    %160 = arith.divf %158, %159 : vector<8x96xf32>
    %161 = vector.extract_strided_slice %154 {offsets = [0, 96], sizes = [8, 32], strides = [1, 1]} : vector<8x128xf32> to vector<8x32xf32>
    %162 = math.tanh %161 : vector<8x32xf32>
    %163 = vector.extract_strided_slice %160 {offsets = [0, 0], sizes = [8, 32], strides = [1, 1]} : vector<8x96xf32> to vector<8x32xf32>
    %164 = vector.extract_strided_slice %160 {offsets = [0, 32], sizes = [8, 32], strides = [1, 1]} : vector<8x96xf32> to vector<8x32xf32>
    %165 = vector.extract_strided_slice %160 {offsets = [0, 64], sizes = [8, 32], strides = [1, 1]} : vector<8x96xf32> to vector<8x32xf32>
    %166 = arith.mulf %164, %148 : vector<8x32xf32>
    %167 = arith.mulf %163, %162 : vector<8x32xf32>
    %168 = arith.addf %166, %167 : vector<8x32xf32>
    %169 = math.tanh %168 : vector<8x32xf32>
    %170 = arith.mulf %165, %169 : vector<8x32xf32>
    %c0_26 = arith.constant 0 : index
    %c0_27 = arith.constant 0 : index
    %171 = vector.load %arg5[%c0_26, %c0_27] : memref<1x32xf32, #tpu.memory_space<vmem>>, vector<1x32xf32>
    %172 = vector.broadcast %171 : vector<1x32xf32> to vector<8x32xf32>
    %173 = arith.mulf %170, %172 : vector<8x32xf32>
    %cst_28 = arith.constant dense<0.000000e+00> : vector<8xf32>
    %174 = vector.multi_reduction <add>, %173, %cst_28 [1] : vector<8x32xf32> to vector<8xf32>
    %175 = vector.shape_cast %174 : vector<8xf32> to vector<8x1xf32>
    %c0_29 = arith.constant 0 : index
    %c0_30 = arith.constant 0 : index
    %176 = vector.load %arg6[%c0_29, %c0_30] : memref<1x1xf32, #tpu.memory_space<vmem>>, vector<1x1xf32>
    %177 = vector.broadcast %176 : vector<1x1xf32> to vector<8x1xf32>
    %178 = arith.addf %175, %177 : vector<8x1xf32>
    %c0_31 = arith.constant 0 : index
    %c0_32 = arith.constant 0 : index
    %179 = vector.load %arg7[%c0_31, %c0_32] : memref<8x1xf32, #tpu.memory_space<vmem>>, vector<8x1xf32>
    tpu.vector_store %arg7[%c0_31, %c0_32], %178 {strides = array<i32>} : memref<8x1xf32, #tpu.memory_space<vmem>>, vector<8x1xf32>,
    return
  }
  func.func @transform_0(%arg0: i32) -> (i32, i32, i32) {
    %c0_i32 = arith.constant 0 : i32
    %c0_i32_0 = arith.constant 0 : i32
    %c0_i32_1 = arith.constant 0 : i32
    return %arg0, %c0_i32, %c0_i32_0 : i32, i32, i32
  }
  func.func @transform_1(%arg0: i32) -> (i32, i32) {
    %c0_i32 = arith.constant 0 : i32
    %c0_i32_0 = arith.constant 0 : i32
    %c0_i32_1 = arith.constant 0 : i32
    return %c0_i32, %c0_i32_0 : i32, i32
  }
  func.func @transform_2(%arg0: i32) -> (i32, i32) {
    %c0_i32 = arith.constant 0 : i32
    %c0_i32_0 = arith.constant 0 : i32
    %c0_i32_1 = arith.constant 0 : i32
    return %c0_i32, %c0_i32_0 : i32, i32
  }
  func.func @transform_3(%arg0: i32) -> (i32, i32) {
    %c0_i32 = arith.constant 0 : i32
    %c0_i32_0 = arith.constant 0 : i32
    %c0_i32_1 = arith.constant 0 : i32
    return %c0_i32, %c0_i32_0 : i32, i32
  }
  func.func @transform_4(%arg0: i32) -> (i32, i32) {
    %c0_i32 = arith.constant 0 : i32
    %c0_i32_0 = arith.constant 0 : i32
    %c0_i32_1 = arith.constant 0 : i32
    return %c0_i32, %c0_i32_0 : i32, i32
  }
  func.func @transform_5(%arg0: i32) -> (i32, i32) {
    %c0_i32 = arith.constant 0 : i32
    %c0_i32_0 = arith.constant 0 : i32
    %c0_i32_1 = arith.constant 0 : i32
    return %c0_i32, %c0_i32_0 : i32, i32
  }
  func.func @transform_6(%arg0: i32) -> (i32, i32) {
    %c0_i32 = arith.constant 0 : i32
    %c0_i32_0 = arith.constant 0 : i32
    return %arg0, %c0_i32 : i32, i32
  }
}

</mosaic_0001>

<llo_original>
// kernel: tpu_custom_call.1
$region0: #{tpu_custom_call.1}
  #allocation0 [shape = 'u32[]', space=smem, size = 0x4, offset = 0x4, fixed_abs, tag = 'smem constant byte address 0x4 - core index']
  #allocation1 [shape = 'u32[144,128]{1,0:T(1,128)}', space=vmem, size = 0x12000, scoped, tag = 'internal scratch']
  #allocation2 [shape = 'f32[1,1]{1,0:T(1,128)S(1)}', space=vmem, size = 0x200, scoped, tag = 'scoped memory for tpu_custom_call.1']
  %s0 = inlined_call_operand.vmem [shape: f32[8,8,4], index: 0, kind: input, shape index: {}]
  %s1 = inlined_call_operand.vmem [shape: f32[4,128], index: 1, kind: input, shape index: {}]
  %s2 = inlined_call_operand.vmem [shape: f32[32,128], index: 2, kind: input, shape index: {}]
  %s3 = inlined_call_operand.vmem [shape: f32[1,128], index: 3, kind: input, shape index: {}]
  %s4 = inlined_call_operand.vmem [shape: f32[1,32], index: 4, kind: input, shape index: {}]
  %s5 = inlined_call_operand.<no memory space> [shape: f32[1,1], index: 5, kind: input, shape index: {}]
  %s6 = inlined_call_operand.vmem [shape: f32[8,1], index: 6, kind: output, shape index: {}]
  %s7 = sld [smem:[#allocation0]]
  $region34: #{tpu_custom_call.1} parent=0
    _
  %s9 = ssub.s32 1, %s7
  %s10 = scalar_select 0, %s9, %s7
  %v11 = vstv %s5
  %12 = vst [vmem:[#allocation2] sm:$0x1] %v11
  // Predicated region
  $region2: #{tpu_custom_call.1} parent=0 // pred_check
    _
  $region3: #{tpu_custom_call.1} parent=0 // pred_check_branch
    %14 = sbr.rel (0) target = $region5
  $region4: #{tpu_custom_call.1} parent=0 // pred_region
    _
  $region5: #{tpu_custom_call.1} parent=0 // pred_fallthru
    _
  // Predicated region
  $region6: #{tpu_custom_call.1} parent=0 // pred_check
    _
  $region7: #{tpu_custom_call.1} parent=0 // pred_check_branch
    %16 = sbr.rel (0) target = $region9
  $region8: #{tpu_custom_call.1} parent=0 // pred_region
    _
  $region9: #{tpu_custom_call.1} parent=0 // pred_fallthru
    _
  // Predicated region
  $region10: #{tpu_custom_call.1} parent=0 // pred_check
    _
  $region11: #{tpu_custom_call.1} parent=0 // pred_check_branch
    %18 = sbr.rel (0) target = $region13
  $region12: #{tpu_custom_call.1} parent=0 // pred_region
    _
  $region13: #{tpu_custom_call.1} parent=0 // pred_fallthru
    _
  // Predicated region
  $region14: #{tpu_custom_call.1} parent=0 // pred_check
    _
  $region15: #{tpu_custom_call.1} parent=0 // pred_check_branch
    %20 = sbr.rel (0) target = $region17
  $region16: #{tpu_custom_call.1} parent=0 // pred_region
    _
  $region17: #{tpu_custom_call.1} parent=0 // pred_fallthru
    _
  // Predicated region
  $region18: #{tpu_custom_call.1} parent=0 // pred_check
    _
  $region19: #{tpu_custom_call.1} parent=0 // pred_check_branch
    %22 = sbr.rel (0) target = $region21
  $region20: #{tpu_custom_call.1} parent=0 // pred_region
    _
  $region21: #{tpu_custom_call.1} parent=0 // pred_fallthru
    _
  // Predicated region
  $region22: #{tpu_custom_call.1} parent=0 // pred_check
    _
  $region23: #{tpu_custom_call.1} parent=0 // pred_check_branch
    %24 = sbr.rel (0) target = $region25
  $region24: #{tpu_custom_call.1} parent=0 // pred_region
    _
  $region25: #{tpu_custom_call.1} parent=0 // pred_fallthru
    _
  %v25 = vld [vmem:[%s0] sm:$0xff]
  %v26 = vld [vmem:[%s0 + $0x8] sm:$0xff]
  %v27 = vld [vmem:[%s0 + $0x10] sm:$0xff]
  %v28 = vld [vmem:[%s0 + $0x18] sm:$0xff]
  %v29 = vld [vmem:[%s0 + $0x20] sm:$0xff]
  %v30 = vld [vmem:[%s0 + $0x28] sm:$0xff]
  %v31 = vld [vmem:[%s0 + $0x30] sm:$0xff]
  %v32 = vld [vmem:[%s0 + $0x38] sm:$0xff]
  %v33 = vld [vmem:[%s1] sm:$0xf]
  %v34 = vld [vmem:[%s3] sm:$0x1]
  %v36 = vlaneseq
  %v37 = vshrl.u32 %v36, 7
  %v38 = vsub.s32 0, %v37
  %v39 = vrot.slane %v34, %v38
  %vm41 = vcmask 31744
  %v43 = vsel %vm41, %v25, 0
  %v46 = vsel %vm41, %v26, 0
  %v49 = vsel %vm41, %v27, 0
  %v52 = vsel %vm41, %v28, 0
  %v55 = vsel %vm41, %v29, 0
  %v58 = vsel %vm41, %v30, 0
  %v61 = vsel %vm41, %v31, 0
  %v64 = vsel %vm41, %v32, 0
  %vm66 = vcmask 1043456
  %v68 = vsel %vm66, %v33, 0
  %70 = vmatprep.subr.mxu0 0.0
  %71 = vmatpush1.msra.mxu0 0.0
  %72 = vmatprep.subr.mxu0 0.0
  %73 = vmatpush1.msra.mxu0 0.0
  %74 = vmatprep.subr.mxu0 0.0
  %75 = vmatpush1.msra.mxu0 0.0
  %76 = vmatprep.subr.mxu0 0.0
  %77 = vmatpush1.msra.mxu0 0.0
  %78 = vmatprep.subr.mxu0 0.0
  %79 = vmatpush1.msra.mxu0 0.0
  %80 = vmatprep.subr.mxu0 0.0
  %81 = vmatpush1.msra.mxu0 0.0
  %82 = vmatprep.subr.mxu0 0.0
  %83 = vmatpush1.msra.mxu0 0.0
  %84 = vmatprep.subr.mxu0 0.0
  %85 = vmatpush1.msra.mxu0 0.0
  %86 = vmatprep.subr.mxu0 0.0
  %87 = vmatpush1.msra.mxu0 0.0
  %88 = vmatprep.subr.mxu0 0.0
  %89 = vmatpush1.msra.mxu0 0.0
  %90 = vmatprep.subr.mxu0 0.0
  %91 = vmatpush1.msra.mxu0 0.0
  %92 = vmatprep.subr.mxu0 0.0
  %93 = vmatpush1.msra.mxu0 0.0
  %94 = vmatprep.subr.mxu0 0.0
  %95 = vmatpush1.msra.mxu0 0.0
  %96 = vmatprep.subr.mxu0 0.0
  %97 = vmatpush1.msra.mxu0 0.0
  %98 = vmatprep.subr.mxu0 0.0
  %99 = vmatpush1.msra.mxu0 0.0
  %100 = vmatprep.subr.mxu0 0.0
  %101 = vmatpush1.msra.mxu0 %v68
  %102 = vmatprep.subr.mxu0 0.0
  %103 = vmatpush2.msra.mxu0 0.0
  %104 = vmatprep.subr.mxu0 0.0
  %105 = vmatpush2.msra.mxu0 0.0
  %106 = vmatprep.subr.mxu0 0.0
  %107 = vmatpush2.msra.mxu0 0.0
  %108 = vmatprep.subr.mxu0 0.0
  %109 = vmatpush2.msra.mxu0 0.0
  %110 = vmatprep.subr.mxu0 0.0
  %111 = vmatpush2.msra.mxu0 0.0
  %112 = vmatprep.subr.mxu0 0.0
  %113 = vmatpush2.msra.mxu0 0.0
  %114 = vmatprep.subr.mxu0 0.0
  %115 = vmatpush2.msra.mxu0 0.0
  %116 = vmatprep.subr.mxu0 0.0
  %117 = vmatpush2.msra.mxu0 0.0
  %118 = vmatprep.subr.mxu0 0.0
  %119 = vmatpush2.msra.mxu0 0.0
  %120 = vmatprep.subr.mxu0 0.0
  %121 = vmatpush2.msra.mxu0 0.0
  %122 = vmatprep.subr.mxu0 0.0
  %123 = vmatpush2.msra.mxu0 0.0
  %124 = vmatprep.subr.mxu0 0.0
  %125 = vmatpush2.msra.mxu0 0.0
  %126 = vmatprep.subr.mxu0 0.0
  %127 = vmatpush2.msra.mxu0 0.0
  %128 = vmatprep.subr.mxu0 0.0
  %129 = vmatpush2.msra.mxu0 0.0
  %130 = vmatprep.subr.mxu0 0.0
  %131 = vmatpush2.msra.mxu0 0.0
  %132 = vmatprep.subr.mxu0 0.0
  %133 = vmatpush2.msra.mxu0 0.0
  %134 = vmatprep.mubr.f32.mxu0 0.0
  %135 = vmatmul.mubr.f32.gmra.mxu0 %v43
  %v136 = vpop.f32.mrf.mxu0
  %v137 = vadd.f32 %v39, %v136
  %v138 = vpop.f32.mrf.mxu0
  %139 = vmatprep.mubr.f32.mxu0 0.0
  %140 = vmatmul.mubr.f32.gmra.mxu0 %v46
  %v141 = vpop.f32.mrf.mxu0
  %v142 = vadd.f32 %v39, %v141
  %v143 = vpop.f32.mrf.mxu0
  %144 = vmatprep.mubr.f32.mxu0 0.0
  %145 = vmatmul.mubr.f32.gmra.mxu0 %v49
  %v146 = vpop.f32.mrf.mxu0
  %v147 = vadd.f32 %v39, %v146
  %v148 = vpop.f32.mrf.mxu0
  %149 = vmatprep.mubr.f32.mxu0 0.0
  %150 = vmatmul.mubr.f32.gmra.mxu0 %v52
  %v151 = vpop.f32.mrf.mxu0
  %v152 = vadd.f32 %v39, %v151
  %v153 = vpop.f32.mrf.mxu0
  %154 = vmatprep.mubr.f32.mxu0 0.0
  %155 = vmatmul.mubr.f32.gmra.mxu0 %v55
  %v156 = vpop.f32.mrf.mxu0
  %v157 = vadd.f32 %v39, %v156
  %v158 = vpop.f32.mrf.mxu0
  %159 = vmatprep.mubr.f32.mxu0 0.0
  %160 = vmatmul.mubr.f32.gmra.mxu0 %v58
  %v161 = vpop.f32.mrf.mxu0
  %v162 = vadd.f32 %v39, %v161
  %v163 = vpop.f32.mrf.mxu0
  %164 = vmatprep.mubr.f32.mxu0 0.0
  %165 = vmatmul.mubr.f32.gmra.mxu0 %v61
  %v166 = vpop.f32.mrf.mxu0
  %v167 = vadd.f32 %v39, %v166
  %v168 = vpop.f32.mrf.mxu0
  %169 = vmatprep.mubr.f32.mxu0 0.0
  %170 = vmatmul.mubr.f32.gmra.mxu0 %v64
  %v171 = vpop.f32.mrf.mxu0
  %v172 = vadd.f32 %v39, %v171
  %v173 = vpop.f32.mrf.mxu0
  %174 = vdwg.mxu0
  %v175 = vld [vmem:[%s2] sm:$0xff]
  %v176 = vld [vmem:[%s2 + $0x8] sm:$0xff]
  %v177 = vld [vmem:[%s2 + $0x10] sm:$0xff]
  %v178 = vld [vmem:[%s2 + $0x18] sm:$0xff]
  %vm179 = vcmask 261120
  %v181 = vsel %vm179, 0.0, 0
  %183 = vmatprep.subr.mxu0 0.0
  %184 = vmatpush1.msra.mxu0 0.0
  %185 = vmatprep.subr.mxu0 0.0
  %186 = vmatpush1.msra.mxu0 0.0
  %187 = vmatprep.subr.mxu0 0.0
  %188 = vmatpush1.msra.mxu0 0.0
  %189 = vmatprep.subr.mxu0 0.0
  %190 = vmatpush1.msra.mxu0 0.0
  %191 = vmatprep.subr.mxu0 0.0
  %192 = vmatpush1.msra.mxu0 0.0
  %193 = vmatprep.subr.mxu0 0.0
  %194 = vmatpush1.msra.mxu0 0.0
  %195 = vmatprep.subr.mxu0 0.0
  %196 = vmatpush1.msra.mxu0 0.0
  %197 = vmatprep.subr.mxu0 0.0
  %198 = vmatpush1.msra.mxu0 0.0
  %199 = vmatprep.subr.mxu0 0.0
  %200 = vmatpush1.msra.mxu0 0.0
  %201 = vmatprep.subr.mxu0 0.0
  %202 = vmatpush1.msra.mxu0 0.0
  %203 = vmatprep.subr.mxu0 0.0
  %204 = vmatpush1.msra.mxu0 0.0
  %205 = vmatprep.subr.mxu0 0.0
  %206 = vmatpush1.msra.mxu0 0.0
  %207 = vmatprep.subr.mxu0 0.0
  %208 = vmatpush1.msra.mxu0 %v178
  %209 = vmatprep.subr.mxu0 0.0
  %210 = vmatpush1.msra.mxu0 %v177
  %211 = vmatprep.subr.mxu0 0.0
  %212 = vmatpush1.msra.mxu0 %v176
  %213 = vmatprep.subr.mxu0 0.0
  %214 = vmatpush1.msra.mxu0 %v175
  %215 = vmatprep.subr.mxu0 0.0
  %216 = vmatpush2.msra.mxu0 0.0
  %217 = vmatprep.subr.mxu0 0.0
  %218 = vmatpush2.msra.mxu0 0.0
  %219 = vmatprep.subr.mxu0 0.0
  %220 = vmatpush2.msra.mxu0 0.0
  %221 = vmatprep.subr.mxu0 0.0
  %222 = vmatpush2.msra.mxu0 0.0
  %223 = vmatprep.subr.mxu0 0.0
  %224 = vmatpush2.msra.mxu0 0.0
  %225 = vmatprep.subr.mxu0 0.0
  %226 = vmatpush2.msra.mxu0 0.0
  %227 = vmatprep.subr.mxu0 0.0
  %228 = vmatpush2.msra.mxu0 0.0
  %229 = vmatprep.subr.mxu0 0.0
  %230 = vmatpush2.msra.mxu0 0.0
  %231 = vmatprep.subr.mxu0 0.0
  %232 = vmatpush2.msra.mxu0 0.0
  %233 = vmatprep.subr.mxu0 0.0
  %234 = vmatpush2.msra.mxu0 0.0
  %235 = vmatprep.subr.mxu0 0.0
  %236 = vmatpush2.msra.mxu0 0.0
  %237 = vmatprep.subr.mxu0 0.0
  %238 = vmatpush2.msra.mxu0 0.0
  %239 = vmatprep.subr.mxu0 0.0
  %240 = vmatpush2.msra.mxu0 0.0
  %241 = vmatprep.subr.mxu0 0.0
  %242 = vmatpush2.msra.mxu0 0.0
  %243 = vmatprep.subr.mxu0 0.0
  %244 = vmatpush2.msra.mxu0 0.0
  %245 = vmatprep.subr.mxu0 0.0
  %246 = vmatpush2.msra.mxu0 0.0
  %247 = vmatprep.mubr.f32.mxu0 0.0
  %248 = vmatmul.mubr.f32.gmra.mxu0 %v181
  %v249 = vpop.f32.mrf.mxu0
  %v250 = vadd.f32 0.0, %v249
  %v251 = vpop.f32.mrf.mxu0
  %252 = vdwg.mxu0
  %v254 = vrot.slane %v250, 1
  %v255 = vrot.slane %v250, 2
  %v256 = vrot.slane %v250, 3
  %v257 = vrot.slane %v250, 4
  %v258 = vrot.slane %v250, 5
  %v259 = vrot.slane %v250, 6
  %v260 = vrot.slane %v250, 7
  %v269 = vadd.f32 %v137, %v250
  %v270 = vadd.f32 %v142, %v254
  %v271 = vadd.f32 %v147, %v255
  %v272 = vadd.f32 %v152, %v256
  %v273 = vadd.f32 %v157, %v257
  %v274 = vadd.f32 %v162, %v258
  %v275 = vadd.f32 %v167, %v259
  %v276 = vadd.f32 %v172, %v260
  %v277 = vxor.u32 %v269, 2147483648
  %v278 = vxor.u32 %v270, 2147483648
  %v279 = vxor.u32 %v271, 2147483648
  %v280 = vxor.u32 %v272, 2147483648
  %v281 = vxor.u32 %v273, 2147483648
  %v282 = vxor.u32 %v274, 2147483648
  %v283 = vxor.u32 %v275, 2147483648
  %v284 = vxor.u32 %v276, 2147483648
  %v285 = vmul.f32 %v277, 1.442695
  %v286 = vpow.pop %v285
  %v287 = vmul.f32 %v278, 1.442695
  %v288 = vpow.pop %v287
  %v289 = vmul.f32 %v279, 1.442695
  %v290 = vpow.pop %v289
  %v291 = vmul.f32 %v280, 1.442695
  %v292 = vpow.pop %v291
  %v293 = vmul.f32 %v281, 1.442695
  %v294 = vpow.pop %v293
  %v295 = vmul.f32 %v282, 1.442695
  %v296 = vpow.pop %v295
  %v297 = vmul.f32 %v283, 1.442695
  %v298 = vpow.pop %v297
  %v299 = vmul.f32 %v284, 1.442695
  %v300 = vpow.pop %v299
  %v301 = vadd.f32 %v286, 1.0
  %v302 = vadd.f32 %v288, 1.0
  %v303 = vadd.f32 %v290, 1.0
  %v304 = vadd.f32 %v292, 1.0
  %v305 = vadd.f32 %v294, 1.0
  %v306 = vadd.f32 %v296, 1.0
  %v307 = vadd.f32 %v298, 1.0
  %v308 = vadd.f32 %v300, 1.0
  %v309 = vrcp.pop %v301
  %v310 = vmul.f32 1.0, %v309
  %v311 = vrcp.pop %v302
  %v312 = vmul.f32 1.0, %v311
  %v313 = vrcp.pop %v303
  %v314 = vmul.f32 1.0, %v313
  %v315 = vrcp.pop %v304
  %v316 = vmul.f32 1.0, %v315
  %v317 = vrcp.pop %v305
  %v318 = vmul.f32 1.0, %v317
  %v319 = vrcp.pop %v306
  %v320 = vmul.f32 1.0, %v319
  %v321 = vrcp.pop %v307
  %v322 = vmul.f32 1.0, %v321
  %v323 = vrcp.pop %v308
  %v324 = vmul.f32 1.0, %v323
  %v325 = vtanh.pop %v269
  %v326 = vtanh.pop %v270
  %v327 = vtanh.pop %v271
  %v328 = vtanh.pop %v272
  %v329 = vtanh.pop %v273
  %v330 = vtanh.pop %v274
  %v331 = vtanh.pop %v275
  %v332 = vtanh.pop %v276
  %v333 = vmul.f32 %v310, 0.0
  %v334 = vmul.f32 %v312, 0.0
  %v335 = vmul.f32 %v314, 0.0
  %v336 = vmul.f32 %v316, 0.0
  %v337 = vmul.f32 %v318, 0.0
  %v338 = vmul.f32 %v320, 0.0
  %v339 = vmul.f32 %v322, 0.0
  %v340 = vmul.f32 %v324, 0.0
  %349 = vrot.lane.b32.xlu0 %v325, 32
  %v350 = vpop.permute.xlu0 %349
  %351 = vrot.lane.b32.xlu0 %v326, 32
  %v352 = vpop.permute.xlu0 %351
  %353 = vrot.lane.b32.xlu0 %v327, 32
  %v354 = vpop.permute.xlu0 %353
  %355 = vrot.lane.b32.xlu0 %v328, 32
  %v356 = vpop.permute.xlu0 %355
  %357 = vrot.lane.b32.xlu0 %v329, 32
  %v358 = vpop.permute.xlu0 %357
  %359 = vrot.lane.b32.xlu0 %v330, 32
  %v360 = vpop.permute.xlu0 %359
  %361 = vrot.lane.b32.xlu0 %v331, 32
  %v362 = vpop.permute.xlu0 %361
  %363 = vrot.lane.b32.xlu0 %v332, 32
  %v364 = vpop.permute.xlu0 %363
  %v373 = vmul.f32 %v310, %v350
  %v374 = vmul.f32 %v312, %v352
  %v375 = vmul.f32 %v314, %v354
  %v376 = vmul.f32 %v316, %v356
  %v377 = vmul.f32 %v318, %v358
  %v378 = vmul.f32 %v320, %v360
  %v379 = vmul.f32 %v322, %v362
  %v380 = vmul.f32 %v324, %v364
  %389 = vrot.lane.b32.xlu0 %v373, 32
  %v390 = vpop.permute.xlu0 %389
  %391 = vrot.lane.b32.xlu0 %v374, 32
  %v392 = vpop.permute.xlu0 %391
  %393 = vrot.lane.b32.xlu0 %v375, 32
  %v394 = vpop.permute.xlu0 %393
  %395 = vrot.lane.b32.xlu0 %v376, 32
  %v396 = vpop.permute.xlu0 %395
  %397 = vrot.lane.b32.xlu0 %v377, 32
  %v398 = vpop.permute.xlu0 %397
  %399 = vrot.lane.b32.xlu0 %v378, 32
  %v400 = vpop.permute.xlu0 %399
  %401 = vrot.lane.b32.xlu0 %v379, 32
  %v402 = vpop.permute.xlu0 %401
  %403 = vrot.lane.b32.xlu0 %v380, 32
  %v404 = vpop.permute.xlu0 %403
  %v413 = vadd.f32 %v333, %v390
  %v414 = vadd.f32 %v334, %v392
  %v415 = vadd.f32 %v335, %v394
  %v416 = vadd.f32 %v336, %v396
  %v417 = vadd.f32 %v337, %v398
  %v418 = vadd.f32 %v338, %v400
  %v419 = vadd.f32 %v339, %v402
  %v420 = vadd.f32 %v340, %v404
  %v421 = vtanh.pop %v413
  %v422 = vtanh.pop %v414
  %v423 = vtanh.pop %v415
  %v424 = vtanh.pop %v416
  %v425 = vtanh.pop %v417
  %v426 = vtanh.pop %v418
  %v427 = vtanh.pop %v419
  %v428 = vtanh.pop %v420
  %437 = vrot.lane.b32.xlu0 %v421, 32
  %v438 = vpop.permute.xlu0 %437
  %439 = vrot.lane.b32.xlu0 %v422, 32
  %v440 = vpop.permute.xlu0 %439
  %441 = vrot.lane.b32.xlu0 %v423, 32
  %v442 = vpop.permute.xlu0 %441
  %443 = vrot.lane.b32.xlu0 %v424, 32
  %v444 = vpop.permute.xlu0 %443
  %445 = vrot.lane.b32.xlu0 %v425, 32
  %v446 = vpop.permute.xlu0 %445
  %447 = vrot.lane.b32.xlu0 %v426, 32
  %v448 = vpop.permute.xlu0 %447
  %449 = vrot.lane.b32.xlu0 %v427, 32
  %v450 = vpop.permute.xlu0 %449
  %451 = vrot.lane.b32.xlu0 %v428, 32
  %v452 = vpop.permute.xlu0 %451
  %v461 = vmul.f32 %v310, %v438
  %v462 = vmul.f32 %v312, %v440
  %v463 = vmul.f32 %v314, %v442
  %v464 = vmul.f32 %v316, %v444
  %v465 = vmul.f32 %v318, %v446
  %v466 = vmul.f32 %v320, %v448
  %v467 = vmul.f32 %v322, %v450
  %v468 = vmul.f32 %v324, %v452
  %v477 = vrot.slane %v462, 7
  %vm478 = vcmask 1041409
  %v479 = vsel %vm478, %v477, %v461
  %v480 = vrot.slane %v463, 6
  %vm481 = vcmask 1042434
  %v482 = vsel %vm481, %v480, %v479
  %v483 = vrot.slane %v464, 5
  %vm484 = vcmask 1043459
  %v485 = vsel %vm484, %v483, %v482
  %v486 = vrot.slane %v465, 4
  %vm487 = vcmask 1044484
  %v488 = vsel %vm487, %v486, %v485
  %v489 = vrot.slane %v466, 3
  %vm490 = vcmask 1045509
  %v491 = vsel %vm490, %v489, %v488
  %v492 = vrot.slane %v467, 2
  %vm493 = vcmask 1046534
  %v494 = vsel %vm493, %v492, %v491
  %v495 = vrot.slane %v468, 1
  %vm496 = vcmask 1047559
  %v497 = vsel %vm496, %v495, %v494
  %498 = vrot.lane.b32.xlu0 %v497, 64
  %v499 = vpop.permute.xlu0 %498
  %v500 = vsel %vm179, %v499, 0
  %502 = vmatprep.subr.mxu0 0.0
  %503 = vmatpush1.msra.mxu0 0.0
  %504 = vmatprep.subr.mxu0 0.0
  %505 = vmatpush1.msra.mxu0 0.0
  %506 = vmatprep.subr.mxu0 0.0
  %507 = vmatpush1.msra.mxu0 0.0
  %508 = vmatprep.subr.mxu0 0.0
  %509 = vmatpush1.msra.mxu0 0.0
  %510 = vmatprep.subr.mxu0 0.0
  %511 = vmatpush1.msra.mxu0 0.0
  %512 = vmatprep.subr.mxu0 0.0
  %513 = vmatpush1.msra.mxu0 0.0
  %514 = vmatprep.subr.mxu0 0.0
  %515 = vmatpush1.msra.mxu0 0.0
  %516 = vmatprep.subr.mxu0 0.0
  %517 = vmatpush1.msra.mxu0 0.0
  %518 = vmatprep.subr.mxu0 0.0
  %519 = vmatpush1.msra.mxu0 0.0
  %520 = vmatprep.subr.mxu0 0.0
  %521 = vmatpush1.msra.mxu0 0.0
  %522 = vmatprep.subr.mxu0 0.0
  %523 = vmatpush1.msra.mxu0 0.0
  %524 = vmatprep.subr.mxu0 0.0
  %525 = vmatpush1.msra.mxu0 0.0
  %526 = vmatprep.subr.mxu0 0.0
  %527 = vmatpush1.msra.mxu0 %v178
  %528 = vmatprep.subr.mxu0 0.0
  %529 = vmatpush1.msra.mxu0 %v177
  %530 = vmatprep.subr.mxu0 0.0
  %531 = vmatpush1.msra.mxu0 %v176
  %532 = vmatprep.subr.mxu0 0.0
  %533 = vmatpush1.msra.mxu0 %v175
  %534 = vmatprep.subr.mxu0 0.0
  %535 = vmatpush2.msra.mxu0 0.0
  %536 = vmatprep.subr.mxu0 0.0
  %537 = vmatpush2.msra.mxu0 0.0
  %538 = vmatprep.subr.mxu0 0.0
  %539 = vmatpush2.msra.mxu0 0.0
  %540 = vmatprep.subr.mxu0 0.0
  %541 = vmatpush2.msra.mxu0 0.0
  %542 = vmatprep.subr.mxu0 0.0
  %543 = vmatpush2.msra.mxu0 0.0
  %544 = vmatprep.subr.mxu0 0.0
  %545 = vmatpush2.msra.mxu0 0.0
  %546 = vmatprep.subr.mxu0 0.0
  %547 = vmatpush2.msra.mxu0 0.0
  %548 = vmatprep.subr.mxu0 0.0
  %549 = vmatpush2.msra.mxu0 0.0
  %550 = vmatprep.subr.mxu0 0.0
  %551 = vmatpush2.msra.mxu0 0.0
  %552 = vmatprep.subr.mxu0 0.0
  %553 = vmatpush2.msra.mxu0 0.0
  %554 = vmatprep.subr.mxu0 0.0
  %555 = vmatpush2.msra.mxu0 0.0
  %556 = vmatprep.subr.mxu0 0.0
  %557 = vmatpush2.msra.mxu0 0.0
  %558 = vmatprep.subr.mxu0 0.0
  %559 = vmatpush2.msra.mxu0 0.0
  %560 = vmatprep.subr.mxu0 0.0
  %561 = vmatpush2.msra.mxu0 0.0
  %562 = vmatprep.subr.mxu0 0.0
  %563 = vmatpush2.msra.mxu0 0.0
  %564 = vmatprep.subr.mxu0 0.0
  %565 = vmatpush2.msra.mxu0 0.0
  %566 = vmatprep.mubr.f32.mxu0 0.0
  %567 = vmatmul.mubr.f32.gmra.mxu0 %v500
  %v568 = vpop.f32.mrf.mxu0
  %v569 = vadd.f32 0.0, %v568
  %v570 = vpop.f32.mrf.mxu0
  %571 = vdwg.mxu0
  %v573 = vrot.slane %v569, 7
  %v574 = vrot.slane %v569, 1
  %v575 = vrot.slane %v569, 2
  %v576 = vrot.slane %v569, 3
  %v577 = vrot.slane %v569, 4
  %v578 = vrot.slane %v569, 5
  %v579 = vrot.slane %v569, 6
  %v588 = vadd.f32 %v137, %v573
  %v589 = vadd.f32 %v142, %v569
  %v590 = vadd.f32 %v147, %v574
  %v591 = vadd.f32 %v152, %v575
  %v592 = vadd.f32 %v157, %v576
  %v593 = vadd.f32 %v162, %v577
  %v594 = vadd.f32 %v167, %v578
  %v595 = vadd.f32 %v172, %v579
  %v596 = vxor.u32 %v588, 2147483648
  %v597 = vxor.u32 %v589, 2147483648
  %v598 = vxor.u32 %v590, 2147483648
  %v599 = vxor.u32 %v591, 2147483648
  %v600 = vxor.u32 %v592, 2147483648
  %v601 = vxor.u32 %v593, 2147483648
  %v602 = vxor.u32 %v594, 2147483648
  %v603 = vxor.u32 %v595, 2147483648
  %v604 = vmul.f32 %v596, 1.442695
  %v605 = vpow.pop %v604
  %v606 = vmul.f32 %v597, 1.442695
  %v607 = vpow.pop %v606
  %v608 = vmul.f32 %v598, 1.442695
  %v609 = vpow.pop %v608
  %v610 = vmul.f32 %v599, 1.442695
  %v611 = vpow.pop %v610
  %v612 = vmul.f32 %v600, 1.442695
  %v613 = vpow.pop %v612
  %v614 = vmul.f32 %v601, 1.442695
  %v615 = vpow.pop %v614
  %v616 = vmul.f32 %v602, 1.442695
  %v617 = vpow.pop %v616
  %v618 = vmul.f32 %v603, 1.442695
  %v619 = vpow.pop %v618
  %v620 = vadd.f32 %v605, 1.0
  %v621 = vadd.f32 %v607, 1.0
  %v622 = vadd.f32 %v609, 1.0
  %v623 = vadd.f32 %v611, 1.0
  %v624 = vadd.f32 %v613, 1.0
  %v625 = vadd.f32 %v615, 1.0
  %v626 = vadd.f32 %v617, 1.0
  %v627 = vadd.f32 %v619, 1.0
  %v628 = vrcp.pop %v620
  %v629 = vmul.f32 1.0, %v628
  %v630 = vrcp.pop %v621
  %v631 = vmul.f32 1.0, %v630
  %v632 = vrcp.pop %v622
  %v633 = vmul.f32 1.0, %v632
  %v634 = vrcp.pop %v623
  %v635 = vmul.f32 1.0, %v634
  %v636 = vrcp.pop %v624
  %v637 = vmul.f32 1.0, %v636
  %v638 = vrcp.pop %v625
  %v639 = vmul.f32 1.0, %v638
  %v640 = vrcp.pop %v626
  %v641 = vmul.f32 1.0, %v640
  %v642 = vrcp.pop %v627
  %v643 = vmul.f32 1.0, %v642
  %v644 = vtanh.pop %v588
  %v645 = vtanh.pop %v589
  %v646 = vtanh.pop %v590
  %v647 = vtanh.pop %v591
  %v648 = vtanh.pop %v592
  %v649 = vtanh.pop %v593
  %v650 = vtanh.pop %v594
  %v651 = vtanh.pop %v595
  %v660 = vrot.slane %v413, 7
  %v661 = vrot.slane %v414, 7
  %v662 = vrot.slane %v415, 7
  %v663 = vrot.slane %v416, 7
  %v664 = vrot.slane %v417, 7
  %v665 = vrot.slane %v418, 7
  %v666 = vrot.slane %v419, 7
  %v667 = vrot.slane %v420, 7
  %v676 = vmul.f32 %v629, %v660
  %v677 = vmul.f32 %v631, %v661
  %v678 = vmul.f32 %v633, %v662
  %v679 = vmul.f32 %v635, %v663
  %v680 = vmul.f32 %v637, %v664
  %v681 = vmul.f32 %v639, %v665
  %v682 = vmul.f32 %v641, %v666
  %v683 = vmul.f32 %v643, %v667
  %692 = vrot.lane.b32.xlu0 %v644, 32
  %v693 = vpop.permute.xlu0 %692
  %694 = vrot.lane.b32.xlu0 %v645, 32
  %v695 = vpop.permute.xlu0 %694
  %696 = vrot.lane.b32.xlu0 %v646, 32
  %v697 = vpop.permute.xlu0 %696
  %698 = vrot.lane.b32.xlu0 %v647, 32
  %v699 = vpop.permute.xlu0 %698
  %700 = vrot.lane.b32.xlu0 %v648, 32
  %v701 = vpop.permute.xlu0 %700
  %702 = vrot.lane.b32.xlu0 %v649, 32
  %v703 = vpop.permute.xlu0 %702
  %704 = vrot.lane.b32.xlu0 %v650, 32
  %v705 = vpop.permute.xlu0 %704
  %706 = vrot.lane.b32.xlu0 %v651, 32
  %v707 = vpop.permute.xlu0 %706
  %v716 = vmul.f32 %v629, %v693
  %v717 = vmul.f32 %v631, %v695
  %v718 = vmul.f32 %v633, %v697
  %v719 = vmul.f32 %v635, %v699
  %v720 = vmul.f32 %v637, %v701
  %v721 = vmul.f32 %v639, %v703
  %v722 = vmul.f32 %v641, %v705
  %v723 = vmul.f32 %v643, %v707
  %732 = vrot.lane.b32.xlu0 %v716, 32
  %v733 = vpop.permute.xlu0 %732
  %734 = vrot.lane.b32.xlu0 %v717, 32
  %v735 = vpop.permute.xlu0 %734
  %736 = vrot.lane.b32.xlu0 %v718, 32
  %v737 = vpop.permute.xlu0 %736
  %738 = vrot.lane.b32.xlu0 %v719, 32
  %v739 = vpop.permute.xlu0 %738
  %740 = vrot.lane.b32.xlu0 %v720, 32
  %v741 = vpop.permute.xlu0 %740
  %742 = vrot.lane.b32.xlu0 %v721, 32
  %v743 = vpop.permute.xlu0 %742
  %744 = vrot.lane.b32.xlu0 %v722, 32
  %v745 = vpop.permute.xlu0 %744
  %746 = vrot.lane.b32.xlu0 %v723, 32
  %v747 = vpop.permute.xlu0 %746
  %v756 = vadd.f32 %v676, %v733
  %v757 = vadd.f32 %v677, %v735
  %v758 = vadd.f32 %v678, %v737
  %v759 = vadd.f32 %v679, %v739
  %v760 = vadd.f32 %v680, %v741
  %v761 = vadd.f32 %v681, %v743
  %v762 = vadd.f32 %v682, %v745
  %v763 = vadd.f32 %v683, %v747
  %v764 = vtanh.pop %v756
  %v765 = vtanh.pop %v757
  %v766 = vtanh.pop %v758
  %v767 = vtanh.pop %v759
  %v768 = vtanh.pop %v760
  %v769 = vtanh.pop %v761
  %v770 = vtanh.pop %v762
  %v771 = vtanh.pop %v763
  %780 = vrot.lane.b32.xlu0 %v764, 32
  %v781 = vpop.permute.xlu0 %780
  %782 = vrot.lane.b32.xlu0 %v765, 32
  %v783 = vpop.permute.xlu0 %782
  %784 = vrot.lane.b32.xlu0 %v766, 32
  %v785 = vpop.permute.xlu0 %784
  %786 = vrot.lane.b32.xlu0 %v767, 32
  %v787 = vpop.permute.xlu0 %786
  %788 = vrot.lane.b32.xlu0 %v768, 32
  %v789 = vpop.permute.xlu0 %788
  %790 = vrot.lane.b32.xlu0 %v769, 32
  %v791 = vpop.permute.xlu0 %790
  %792 = vrot.lane.b32.xlu0 %v770, 32
  %v793 = vpop.permute.xlu0 %792
  %794 = vrot.lane.b32.xlu0 %v771, 32
  %v795 = vpop.permute.xlu0 %794
  %v804 = vmul.f32 %v629, %v781
  %v805 = vmul.f32 %v631, %v783
  %v806 = vmul.f32 %v633, %v785
  %v807 = vmul.f32 %v635, %v787
  %v808 = vmul.f32 %v637, %v789
  %v809 = vmul.f32 %v639, %v791
  %v810 = vmul.f32 %v641, %v793
  %v811 = vmul.f32 %v643, %v795
  %v820 = vrot.slane %v804, 1
  %v821 = vsel %vm478, %v805, %v820
  %v822 = vrot.slane %v806, 7
  %v823 = vsel %vm481, %v822, %v821
  %v824 = vrot.slane %v807, 6
  %v825 = vsel %vm484, %v824, %v823
  %v826 = vrot.slane %v808, 5
  %v827 = vsel %vm487, %v826, %v825
  %v828 = vrot.slane %v809, 4
  %v829 = vsel %vm490, %v828, %v827
  %v830 = vrot.slane %v810, 3
  %v831 = vsel %vm493, %v830, %v829
  %v832 = vrot.slane %v811, 2
  %v833 = vsel %vm496, %v832, %v831
  %834 = vrot.lane.b32.xlu0 %v833, 64
  %v835 = vpop.permute.xlu0 %834
  %v836 = vsel %vm179, %v835, 0
  %838 = vmatprep.subr.mxu0 0.0
  %839 = vmatpush1.msra.mxu0 0.0
  %840 = vmatprep.subr.mxu0 0.0
  %841 = vmatpush1.msra.mxu0 0.0
  %842 = vmatprep.subr.mxu0 0.0
  %843 = vmatpush1.msra.mxu0 0.0
  %844 = vmatprep.subr.mxu0 0.0
  %845 = vmatpush1.msra.mxu0 0.0
  %846 = vmatprep.subr.mxu0 0.0
  %847 = vmatpush1.msra.mxu0 0.0
  %848 = vmatprep.subr.mxu0 0.0
  %849 = vmatpush1.msra.mxu0 0.0
  %850 = vmatprep.subr.mxu0 0.0
  %851 = vmatpush1.msra.mxu0 0.0
  %852 = vmatprep.subr.mxu0 0.0
  %853 = vmatpush1.msra.mxu0 0.0
  %854 = vmatprep.subr.mxu0 0.0
  %855 = vmatpush1.msra.mxu0 0.0
  %856 = vmatprep.subr.mxu0 0.0
  %857 = vmatpush1.msra.mxu0 0.0
  %858 = vmatprep.subr.mxu0 0.0
  %859 = vmatpush1.msra.mxu0 0.0
  %860 = vmatprep.subr.mxu0 0.0
  %861 = vmatpush1.msra.mxu0 0.0
  %862 = vmatprep.subr.mxu0 0.0
  %863 = vmatpush1.msra.mxu0 %v178
  %864 = vmatprep.subr.mxu0 0.0
  %865 = vmatpush1.msra.mxu0 %v177
  %866 = vmatprep.subr.mxu0 0.0
  %867 = vmatpush1.msra.mxu0 %v176
  %868 = vmatprep.subr.mxu0 0.0
  %869 = vmatpush1.msra.mxu0 %v175
  %870 = vmatprep.subr.mxu0 0.0
  %871 = vmatpush2.msra.mxu0 0.0
  %872 = vmatprep.subr.mxu0 0.0
  %873 = vmatpush2.msra.mxu0 0.0
  %874 = vmatprep.subr.mxu0 0.0
  %875 = vmatpush2.msra.mxu0 0.0
  %876 = vmatprep.subr.mxu0 0.0
  %877 = vmatpush2.msra.mxu0 0.0
  %878 = vmatprep.subr.mxu0 0.0
  %879 = vmatpush2.msra.mxu0 0.0
  %880 = vmatprep.subr.mxu0 0.0
  %881 = vmatpush2.msra.mxu0 0.0
  %882 = vmatprep.subr.mxu0 0.0
  %883 = vmatpush2.msra.mxu0 0.0
  %884 = vmatprep.subr.mxu0 0.0
  %885 = vmatpush2.msra.mxu0 0.0
  %886 = vmatprep.subr.mxu0 0.0
  %887 = vmatpush2.msra.mxu0 0.0
  %888 = vmatprep.subr.mxu0 0.0
  %889 = vmatpush2.msra.mxu0 0.0
  %890 = vmatprep.subr.mxu0 0.0
  %891 = vmatpush2.msra.mxu0 0.0
  %892 = vmatprep.subr.mxu0 0.0
  %893 = vmatpush2.msra.mxu0 0.0
  %894 = vmatprep.subr.mxu0 0.0
  %895 = vmatpush2.msra.mxu0 0.0
  %896 = vmatprep.subr.mxu0 0.0
  %897 = vmatpush2.msra.mxu0 0.0
  %898 = vmatprep.subr.mxu0 0.0
  %899 = vmatpush2.msra.mxu0 0.0
  %900 = vmatprep.subr.mxu0 0.0
  %901 = vmatpush2.msra.mxu0 0.0
  %902 = vmatprep.mubr.f32.mxu0 0.0
  %903 = vmatmul.mubr.f32.gmra.mxu0 %v836
  %v904 = vpop.f32.mrf.mxu0
  %v905 = vadd.f32 0.0, %v904
  %v906 = vpop.f32.mrf.mxu0
  %907 = vdwg.mxu0
  %v909 = vrot.slane %v905, 6
  %v910 = vrot.slane %v905, 7
  %v911 = vrot.slane %v905, 1
  %v912 = vrot.slane %v905, 2
  %v913 = vrot.slane %v905, 3
  %v914 = vrot.slane %v905, 4
  %v915 = vrot.slane %v905, 5
  %v924 = vadd.f32 %v137, %v909
  %v925 = vadd.f32 %v142, %v910
  %v926 = vadd.f32 %v147, %v905
  %v927 = vadd.f32 %v152, %v911
  %v928 = vadd.f32 %v157, %v912
  %v929 = vadd.f32 %v162, %v913
  %v930 = vadd.f32 %v167, %v914
  %v931 = vadd.f32 %v172, %v915
  %v932 = vxor.u32 %v924, 2147483648
  %v933 = vxor.u32 %v925, 2147483648
  %v934 = vxor.u32 %v926, 2147483648
  %v935 = vxor.u32 %v927, 2147483648
  %v936 = vxor.u32 %v928, 2147483648
  %v937 = vxor.u32 %v929, 2147483648
  %v938 = vxor.u32 %v930, 2147483648
  %v939 = vxor.u32 %v931, 2147483648
  %v940 = vmul.f32 %v932, 1.442695
  %v941 = vpow.pop %v940
  %v942 = vmul.f32 %v933, 1.442695
  %v943 = vpow.pop %v942
  %v944 = vmul.f32 %v934, 1.442695
  %v945 = vpow.pop %v944
  %v946 = vmul.f32 %v935, 1.442695
  %v947 = vpow.pop %v946
  %v948 = vmul.f32 %v936, 1.442695
  %v949 = vpow.pop %v948
  %v950 = vmul.f32 %v937, 1.442695
  %v951 = vpow.pop %v950
  %v952 = vmul.f32 %v938, 1.442695
  %v953 = vpow.pop %v952
  %v954 = vmul.f32 %v939, 1.442695
  %v955 = vpow.pop %v954
  %v956 = vadd.f32 %v941, 1.0
  %v957 = vadd.f32 %v943, 1.0
  %v958 = vadd.f32 %v945, 1.0
  %v959 = vadd.f32 %v947, 1.0
  %v960 = vadd.f32 %v949, 1.0
  %v961 = vadd.f32 %v951, 1.0
  %v962 = vadd.f32 %v953, 1.0
  %v963 = vadd.f32 %v955, 1.0
  %v964 = vrcp.pop %v956
  %v965 = vmul.f32 1.0, %v964
  %v966 = vrcp.pop %v957
  %v967 = vmul.f32 1.0, %v966
  %v968 = vrcp.pop %v958
  %v969 = vmul.f32 1.0, %v968
  %v970 = vrcp.pop %v959
  %v971 = vmul.f32 1.0, %v970
  %v972 = vrcp.pop %v960
  %v973 = vmul.f32 1.0, %v972
  %v974 = vrcp.pop %v961
  %v975 = vmul.f32 1.0, %v974
  %v976 = vrcp.pop %v962
  %v977 = vmul.f32 1.0, %v976
  %v978 = vrcp.pop %v963
  %v979 = vmul.f32 1.0, %v978
  %v980 = vtanh.pop %v924
  %v981 = vtanh.pop %v925
  %v982 = vtanh.pop %v926
  %v983 = vtanh.pop %v927
  %v984 = vtanh.pop %v928
  %v985 = vtanh.pop %v929
  %v986 = vtanh.pop %v930
  %v987 = vtanh.pop %v931
  %v996 = vrot.slane %v756, 7
  %v997 = vrot.slane %v757, 7
  %v998 = vrot.slane %v758, 7
  %v999 = vrot.slane %v759, 7
  %v1000 = vrot.slane %v760, 7
  %v1001 = vrot.slane %v761, 7
  %v1002 = vrot.slane %v762, 7
  %v1003 = vrot.slane %v763, 7
  %v1012 = vmul.f32 %v965, %v996
  %v1013 = vmul.f32 %v967, %v997
  %v1014 = vmul.f32 %v969, %v998
  %v1015 = vmul.f32 %v971, %v999
  %v1016 = vmul.f32 %v973, %v1000
  %v1017 = vmul.f32 %v975, %v1001
  %v1018 = vmul.f32 %v977, %v1002
  %v1019 = vmul.f32 %v979, %v1003
  %1028 = vrot.lane.b32.xlu0 %v980, 32
  %v1029 = vpop.permute.xlu0 %1028
  %1030 = vrot.lane.b32.xlu0 %v981, 32
  %v1031 = vpop.permute.xlu0 %1030
  %1032 = vrot.lane.b32.xlu0 %v982, 32
  %v1033 = vpop.permute.xlu0 %1032
  %1034 = vrot.lane.b32.xlu0 %v983, 32
  %v1035 = vpop.permute.xlu0 %1034
  %1036 = vrot.lane.b32.xlu0 %v984, 32
  %v1037 = vpop.permute.xlu0 %1036
  %1038 = vrot.lane.b32.xlu0 %v985, 32
  %v1039 = vpop.permute.xlu0 %1038
  %1040 = vrot.lane.b32.xlu0 %v986, 32
  %v1041 = vpop.permute.xlu0 %1040
  %1042 = vrot.lane.b32.xlu0 %v987, 32
  %v1043 = vpop.permute.xlu0 %1042
  %v1052 = vmul.f32 %v965, %v1029
  %v1053 = vmul.f32 %v967, %v1031
  %v1054 = vmul.f32 %v969, %v1033
  %v1055 = vmul.f32 %v971, %v1035
  %v1056 = vmul.f32 %v973, %v1037
  %v1057 = vmul.f32 %v975, %v1039
  %v1058 = vmul.f32 %v977, %v1041
  %v1059 = vmul.f32 %v979, %v1043
  %1068 = vrot.lane.b32.xlu0 %v1052, 32
  %v1069 = vpop.permute.xlu0 %1068
  %1070 = vrot.lane.b32.xlu0 %v1053, 32
  %v1071 = vpop.permute.xlu0 %1070
  %1072 = vrot.lane.b32.xlu0 %v1054, 32
  %v1073 = vpop.permute.xlu0 %1072
  %1074 = vrot.lane.b32.xlu0 %v1055, 32
  %v1075 = vpop.permute.xlu0 %1074
  %1076 = vrot.lane.b32.xlu0 %v1056, 32
  %v1077 = vpop.permute.xlu0 %1076
  %1078 = vrot.lane.b32.xlu0 %v1057, 32
  %v1079 = vpop.permute.xlu0 %1078
  %1080 = vrot.lane.b32.xlu0 %v1058, 32
  %v1081 = vpop.permute.xlu0 %1080
  %1082 = vrot.lane.b32.xlu0 %v1059, 32
  %v1083 = vpop.permute.xlu0 %1082
  %v1092 = vadd.f32 %v1012, %v1069
  %v1093 = vadd.f32 %v1013, %v1071
  %v1094 = vadd.f32 %v1014, %v1073
  %v1095 = vadd.f32 %v1015, %v1075
  %v1096 = vadd.f32 %v1016, %v1077
  %v1097 = vadd.f32 %v1017, %v1079
  %v1098 = vadd.f32 %v1018, %v1081
  %v1099 = vadd.f32 %v1019, %v1083
  %v1100 = vtanh.pop %v1092
  %v1101 = vtanh.pop %v1093
  %v1102 = vtanh.pop %v1094
  %v1103 = vtanh.pop %v1095
  %v1104 = vtanh.pop %v1096
  %v1105 = vtanh.pop %v1097
  %v1106 = vtanh.pop %v1098
  %v1107 = vtanh.pop %v1099
  %1116 = vrot.lane.b32.xlu0 %v1100, 32
  %v1117 = vpop.permute.xlu0 %1116
  %1118 = vrot.lane.b32.xlu0 %v1101, 32
  %v1119 = vpop.permute.xlu0 %1118
  %1120 = vrot.lane.b32.xlu0 %v1102, 32
  %v1121 = vpop.permute.xlu0 %1120
  %1122 = vrot.lane.b32.xlu0 %v1103, 32
  %v1123 = vpop.permute.xlu0 %1122
  %1124 = vrot.lane.b32.xlu0 %v1104, 32
  %v1125 = vpop.permute.xlu0 %1124
  %1126 = vrot.lane.b32.xlu0 %v1105, 32
  %v1127 = vpop.permute.xlu0 %1126
  %1128 = vrot.lane.b32.xlu0 %v1106, 32
  %v1129 = vpop.permute.xlu0 %1128
  %1130 = vrot.lane.b32.xlu0 %v1107, 32
  %v1131 = vpop.permute.xlu0 %1130
  %v1140 = vmul.f32 %v965, %v1117
  %v1141 = vmul.f32 %v967, %v1119
  %v1142 = vmul.f32 %v969, %v1121
  %v1143 = vmul.f32 %v971, %v1123
  %v1144 = vmul.f32 %v973, %v1125
  %v1145 = vmul.f32 %v975, %v1127
  %v1146 = vmul.f32 %v977, %v1129
  %v1147 = vmul.f32 %v979, %v1131
  %v1156 = vrot.slane %v1140, 2
  %v1157 = vrot.slane %v1141, 1
  %v1158 = vsel %vm478, %v1157, %v1156
  %v1159 = vsel %vm481, %v1142, %v1158
  %v1160 = vrot.slane %v1143, 7
  %v1161 = vsel %vm484, %v1160, %v1159
  %v1162 = vrot.slane %v1144, 6
  %v1163 = vsel %vm487, %v1162, %v1161
  %v1164 = vrot.slane %v1145, 5
  %v1165 = vsel %vm490, %v1164, %v1163
  %v1166 = vrot.slane %v1146, 4
  %v1167 = vsel %vm493, %v1166, %v1165
  %v1168 = vrot.slane %v1147, 3
  %v1169 = vsel %vm496, %v1168, %v1167
  %1170 = vrot.lane.b32.xlu0 %v1169, 64
  %v1171 = vpop.permute.xlu0 %1170
  %v1172 = vsel %vm179, %v1171, 0
  %1174 = vmatprep.subr.mxu0 0.0
  %1175 = vmatpush1.msra.mxu0 0.0
  %1176 = vmatprep.subr.mxu0 0.0
  %1177 = vmatpush1.msra.mxu0 0.0
  %1178 = vmatprep.subr.mxu0 0.0
  %1179 = vmatpush1.msra.mxu0 0.0
  %1180 = vmatprep.subr.mxu0 0.0
  %1181 = vmatpush1.msra.mxu0 0.0
  %1182 = vmatprep.subr.mxu0 0.0
  %1183 = vmatpush1.msra.mxu0 0.0
  %1184 = vmatprep.subr.mxu0 0.0
  %1185 = vmatpush1.msra.mxu0 0.0
  %1186 = vmatprep.subr.mxu0 0.0
  %1187 = vmatpush1.msra.mxu0 0.0
  %1188 = vmatprep.subr.mxu0 0.0
  %1189 = vmatpush1.msra.mxu0 0.0
  %1190 = vmatprep.subr.mxu0 0.0
  %1191 = vmatpush1.msra.mxu0 0.0
  %1192 = vmatprep.subr.mxu0 0.0
  %1193 = vmatpush1.msra.mxu0 0.0
  %1194 = vmatprep.subr.mxu0 0.0
  %1195 = vmatpush1.msra.mxu0 0.0
  %1196 = vmatprep.subr.mxu0 0.0
  %1197 = vmatpush1.msra.mxu0 0.0
  %1198 = vmatprep.subr.mxu0 0.0
  %1199 = vmatpush1.msra.mxu0 %v178
  %1200 = vmatprep.subr.mxu0 0.0
  %1201 = vmatpush1.msra.mxu0 %v177
  %1202 = vmatprep.subr.mxu0 0.0
  %1203 = vmatpush1.msra.mxu0 %v176
  %1204 = vmatprep.subr.mxu0 0.0
  %1205 = vmatpush1.msra.mxu0 %v175
  %1206 = vmatprep.subr.mxu0 0.0
  %1207 = vmatpush2.msra.mxu0 0.0
  %1208 = vmatprep.subr.mxu0 0.0
  %1209 = vmatpush2.msra.mxu0 0.0
  %1210 = vmatprep.subr.mxu0 0.0
  %1211 = vmatpush2.msra.mxu0 0.0
  %1212 = vmatprep.subr.mxu0 0.0
  %1213 = vmatpush2.msra.mxu0 0.0
  %1214 = vmatprep.subr.mxu0 0.0
  %1215 = vmatpush2.msra.mxu0 0.0
  %1216 = vmatprep.subr.mxu0 0.0
  %1217 = vmatpush2.msra.mxu0 0.0
  %1218 = vmatprep.subr.mxu0 0.0
  %1219 = vmatpush2.msra.mxu0 0.0
  %1220 = vmatprep.subr.mxu0 0.0
  %1221 = vmatpush2.msra.mxu0 0.0
  %1222 = vmatprep.subr.mxu0 0.0
  %1223 = vmatpush2.msra.mxu0 0.0
  %1224 = vmatprep.subr.mxu0 0.0
  %1225 = vmatpush2.msra.mxu0 0.0
  %1226 = vmatprep.subr.mxu0 0.0
  %1227 = vmatpush2.msra.mxu0 0.0
  %1228 = vmatprep.subr.mxu0 0.0
  %1229 = vmatpush2.msra.mxu0 0.0
  %1230 = vmatprep.subr.mxu0 0.0
  %1231 = vmatpush2.msra.mxu0 0.0
  %1232 = vmatprep.subr.mxu0 0.0
  %1233 = vmatpush2.msra.mxu0 0.0
  %1234 = vmatprep.subr.mxu0 0.0
  %1235 = vmatpush2.msra.mxu0 0.0
  %1236 = vmatprep.subr.mxu0 0.0
  %1237 = vmatpush2.msra.mxu0 0.0
  %1238 = vmatprep.mubr.f32.mxu0 0.0
  %1239 = vmatmul.mubr.f32.gmra.mxu0 %v1172
  %v1240 = vpop.f32.mrf.mxu0
  %v1241 = vadd.f32 0.0, %v1240
  %v1242 = vpop.f32.mrf.mxu0
  %1243 = vdwg.mxu0
  %v1245 = vrot.slane %v1241, 5
  %v1246 = vrot.slane %v1241, 6
  %v1247 = vrot.slane %v1241, 7
  %v1248 = vrot.slane %v1241, 1
  %v1249 = vrot.slane %v1241, 2
  %v1250 = vrot.slane %v1241, 3
  %v1251 = vrot.slane %v1241, 4
  %v1260 = vadd.f32 %v137, %v1245
  %v1261 = vadd.f32 %v142, %v1246
  %v1262 = vadd.f32 %v147, %v1247
  %v1263 = vadd.f32 %v152, %v1241
  %v1264 = vadd.f32 %v157, %v1248
  %v1265 = vadd.f32 %v162, %v1249
  %v1266 = vadd.f32 %v167, %v1250
  %v1267 = vadd.f32 %v172, %v1251
  %v1268 = vxor.u32 %v1260, 2147483648
  %v1269 = vxor.u32 %v1261, 2147483648
  %v1270 = vxor.u32 %v1262, 2147483648
  %v1271 = vxor.u32 %v1263, 2147483648
  %v1272 = vxor.u32 %v1264, 2147483648
  %v1273 = vxor.u32 %v1265, 2147483648
  %v1274 = vxor.u32 %v1266, 2147483648
  %v1275 = vxor.u32 %v1267, 2147483648
  %v1276 = vmul.f32 %v1268, 1.442695
  %v1277 = vpow.pop %v1276
  %v1278 = vmul.f32 %v1269, 1.442695
  %v1279 = vpow.pop %v1278
  %v1280 = vmul.f32 %v1270, 1.442695
  %v1281 = vpow.pop %v1280
  %v1282 = vmul.f32 %v1271, 1.442695
  %v1283 = vpow.pop %v1282
  %v1284 = vmul.f32 %v1272, 1.442695
  %v1285 = vpow.pop %v1284
  %v1286 = vmul.f32 %v1273, 1.442695
  %v1287 = vpow.pop %v1286
  %v1288 = vmul.f32 %v1274, 1.442695
  %v1289 = vpow.pop %v1288
  %v1290 = vmul.f32 %v1275, 1.442695
  %v1291 = vpow.pop %v1290
  %v1292 = vadd.f32 %v1277, 1.0
  %v1293 = vadd.f32 %v1279, 1.0
  %v1294 = vadd.f32 %v1281, 1.0
  %v1295 = vadd.f32 %v1283, 1.0
  %v1296 = vadd.f32 %v1285, 1.0
  %v1297 = vadd.f32 %v1287, 1.0
  %v1298 = vadd.f32 %v1289, 1.0
  %v1299 = vadd.f32 %v1291, 1.0
  %v1300 = vrcp.pop %v1292
  %v1301 = vmul.f32 1.0, %v1300
  %v1302 = vrcp.pop %v1293
  %v1303 = vmul.f32 1.0, %v1302
  %v1304 = vrcp.pop %v1294
  %v1305 = vmul.f32 1.0, %v1304
  %v1306 = vrcp.pop %v1295
  %v1307 = vmul.f32 1.0, %v1306
  %v1308 = vrcp.pop %v1296
  %v1309 = vmul.f32 1.0, %v1308
  %v1310 = vrcp.pop %v1297
  %v1311 = vmul.f32 1.0, %v1310
  %v1312 = vrcp.pop %v1298
  %v1313 = vmul.f32 1.0, %v1312
  %v1314 = vrcp.pop %v1299
  %v1315 = vmul.f32 1.0, %v1314
  %v1316 = vtanh.pop %v1260
  %v1317 = vtanh.pop %v1261
  %v1318 = vtanh.pop %v1262
  %v1319 = vtanh.pop %v1263
  %v1320 = vtanh.pop %v1264
  %v1321 = vtanh.pop %v1265
  %v1322 = vtanh.pop %v1266
  %v1323 = vtanh.pop %v1267
  %v1332 = vrot.slane %v1092, 7
  %v1333 = vrot.slane %v1093, 7
  %v1334 = vrot.slane %v1094, 7
  %v1335 = vrot.slane %v1095, 7
  %v1336 = vrot.slane %v1096, 7
  %v1337 = vrot.slane %v1097, 7
  %v1338 = vrot.slane %v1098, 7
  %v1339 = vrot.slane %v1099, 7
  %v1348 = vmul.f32 %v1301, %v1332
  %v1349 = vmul.f32 %v1303, %v1333
  %v1350 = vmul.f32 %v1305, %v1334
  %v1351 = vmul.f32 %v1307, %v1335
  %v1352 = vmul.f32 %v1309, %v1336
  %v1353 = vmul.f32 %v1311, %v1337
  %v1354 = vmul.f32 %v1313, %v1338
  %v1355 = vmul.f32 %v1315, %v1339
  %1364 = vrot.lane.b32.xlu0 %v1316, 32
  %v1365 = vpop.permute.xlu0 %1364
  %1366 = vrot.lane.b32.xlu0 %v1317, 32
  %v1367 = vpop.permute.xlu0 %1366
  %1368 = vrot.lane.b32.xlu0 %v1318, 32
  %v1369 = vpop.permute.xlu0 %1368
  %1370 = vrot.lane.b32.xlu0 %v1319, 32
  %v1371 = vpop.permute.xlu0 %1370
  %1372 = vrot.lane.b32.xlu0 %v1320, 32
  %v1373 = vpop.permute.xlu0 %1372
  %1374 = vrot.lane.b32.xlu0 %v1321, 32
  %v1375 = vpop.permute.xlu0 %1374
  %1376 = vrot.lane.b32.xlu0 %v1322, 32
  %v1377 = vpop.permute.xlu0 %1376
  %1378 = vrot.lane.b32.xlu0 %v1323, 32
  %v1379 = vpop.permute.xlu0 %1378
  %v1388 = vmul.f32 %v1301, %v1365
  %v1389 = vmul.f32 %v1303, %v1367
  %v1390 = vmul.f32 %v1305, %v1369
  %v1391 = vmul.f32 %v1307, %v1371
  %v1392 = vmul.f32 %v1309, %v1373
  %v1393 = vmul.f32 %v1311, %v1375
  %v1394 = vmul.f32 %v1313, %v1377
  %v1395 = vmul.f32 %v1315, %v1379
  %1404 = vrot.lane.b32.xlu0 %v1388, 32
  %v1405 = vpop.permute.xlu0 %1404
  %1406 = vrot.lane.b32.xlu0 %v1389, 32
  %v1407 = vpop.permute.xlu0 %1406
  %1408 = vrot.lane.b32.xlu0 %v1390, 32
  %v1409 = vpop.permute.xlu0 %1408
  %1410 = vrot.lane.b32.xlu0 %v1391, 32
  %v1411 = vpop.permute.xlu0 %1410
  %1412 = vrot.lane.b32.xlu0 %v1392, 32
  %v1413 = vpop.permute.xlu0 %1412
  %1414 = vrot.lane.b32.xlu0 %v1393, 32
  %v1415 = vpop.permute.xlu0 %1414
  %1416 = vrot.lane.b32.xlu0 %v1394, 32
  %v1417 = vpop.permute.xlu0 %1416
  %1418 = vrot.lane.b32.xlu0 %v1395, 32
  %v1419 = vpop.permute.xlu0 %1418
  %v1428 = vadd.f32 %v1348, %v1405
  %v1429 = vadd.f32 %v1349, %v1407
  %v1430 = vadd.f32 %v1350, %v1409
  %v1431 = vadd.f32 %v1351, %v1411
  %v1432 = vadd.f32 %v1352, %v1413
  %v1433 = vadd.f32 %v1353, %v1415
  %v1434 = vadd.f32 %v1354, %v1417
  %v1435 = vadd.f32 %v1355, %v1419
  %v1436 = vtanh.pop %v1428
  %v1437 = vtanh.pop %v1429
  %v1438 = vtanh.pop %v1430
  %v1439 = vtanh.pop %v1431
  %v1440 = vtanh.pop %v1432
  %v1441 = vtanh.pop %v1433
  %v1442 = vtanh.pop %v1434
  %v1443 = vtanh.pop %v1435
  %1452 = vrot.lane.b32.xlu0 %v1436, 32
  %v1453 = vpop.permute.xlu0 %1452
  %1454 = vrot.lane.b32.xlu0 %v1437, 32
  %v1455 = vpop.permute.xlu0 %1454
  %1456 = vrot.lane.b32.xlu0 %v1438, 32
  %v1457 = vpop.permute.xlu0 %1456
  %1458 = vrot.lane.b32.xlu0 %v1439, 32
  %v1459 = vpop.permute.xlu0 %1458
  %1460 = vrot.lane.b32.xlu0 %v1440, 32
  %v1461 = vpop.permute.xlu0 %1460
  %1462 = vrot.lane.b32.xlu0 %v1441, 32
  %v1463 = vpop.permute.xlu0 %1462
  %1464 = vrot.lane.b32.xlu0 %v1442, 32
  %v1465 = vpop.permute.xlu0 %1464
  %1466 = vrot.lane.b32.xlu0 %v1443, 32
  %v1467 = vpop.permute.xlu0 %1466
  %v1476 = vmul.f32 %v1301, %v1453
  %v1477 = vmul.f32 %v1303, %v1455
  %v1478 = vmul.f32 %v1305, %v1457
  %v1479 = vmul.f32 %v1307, %v1459
  %v1480 = vmul.f32 %v1309, %v1461
  %v1481 = vmul.f32 %v1311, %v1463
  %v1482 = vmul.f32 %v1313, %v1465
  %v1483 = vmul.f32 %v1315, %v1467
  %v1492 = vrot.slane %v1476, 3
  %v1493 = vrot.slane %v1477, 2
  %v1494 = vsel %vm478, %v1493, %v1492
  %v1495 = vrot.slane %v1478, 1
  %v1496 = vsel %vm481, %v1495, %v1494
  %v1497 = vsel %vm484, %v1479, %v1496
  %v1498 = vrot.slane %v1480, 7
  %v1499 = vsel %vm487, %v1498, %v1497
  %v1500 = vrot.slane %v1481, 6
  %v1501 = vsel %vm490, %v1500, %v1499
  %v1502 = vrot.slane %v1482, 5
  %v1503 = vsel %vm493, %v1502, %v1501
  %v1504 = vrot.slane %v1483, 4
  %v1505 = vsel %vm496, %v1504, %v1503
  %1506 = vrot.lane.b32.xlu0 %v1505, 64
  %v1507 = vpop.permute.xlu0 %1506
  %v1508 = vsel %vm179, %v1507, 0
  %1510 = vmatprep.subr.mxu0 0.0
  %1511 = vmatpush1.msra.mxu0 0.0
  %1512 = vmatprep.subr.mxu0 0.0
  %1513 = vmatpush1.msra.mxu0 0.0
  %1514 = vmatprep.subr.mxu0 0.0
  %1515 = vmatpush1.msra.mxu0 0.0
  %1516 = vmatprep.subr.mxu0 0.0
  %1517 = vmatpush1.msra.mxu0 0.0
  %1518 = vmatprep.subr.mxu0 0.0
  %1519 = vmatpush1.msra.mxu0 0.0
  %1520 = vmatprep.subr.mxu0 0.0
  %1521 = vmatpush1.msra.mxu0 0.0
  %1522 = vmatprep.subr.mxu0 0.0
  %1523 = vmatpush1.msra.mxu0 0.0
  %1524 = vmatprep.subr.mxu0 0.0
  %1525 = vmatpush1.msra.mxu0 0.0
  %1526 = vmatprep.subr.mxu0 0.0
  %1527 = vmatpush1.msra.mxu0 0.0
  %1528 = vmatprep.subr.mxu0 0.0
  %1529 = vmatpush1.msra.mxu0 0.0
  %1530 = vmatprep.subr.mxu0 0.0
  %1531 = vmatpush1.msra.mxu0 0.0
  %1532 = vmatprep.subr.mxu0 0.0
  %1533 = vmatpush1.msra.mxu0 0.0
  %1534 = vmatprep.subr.mxu0 0.0
  %1535 = vmatpush1.msra.mxu0 %v178
  %1536 = vmatprep.subr.mxu0 0.0
  %1537 = vmatpush1.msra.mxu0 %v177
  %1538 = vmatprep.subr.mxu0 0.0
  %1539 = vmatpush1.msra.mxu0 %v176
  %1540 = vmatprep.subr.mxu0 0.0
  %1541 = vmatpush1.msra.mxu0 %v175
  %1542 = vmatprep.subr.mxu0 0.0
  %1543 = vmatpush2.msra.mxu0 0.0
  %1544 = vmatprep.subr.mxu0 0.0
  %1545 = vmatpush2.msra.mxu0 0.0
  %1546 = vmatprep.subr.mxu0 0.0
  %1547 = vmatpush2.msra.mxu0 0.0
  %1548 = vmatprep.subr.mxu0 0.0
  %1549 = vmatpush2.msra.mxu0 0.0
  %1550 = vmatprep.subr.mxu0 0.0
  %1551 = vmatpush2.msra.mxu0 0.0
  %1552 = vmatprep.subr.mxu0 0.0
  %1553 = vmatpush2.msra.mxu0 0.0
  %1554 = vmatprep.subr.mxu0 0.0
  %1555 = vmatpush2.msra.mxu0 0.0
  %1556 = vmatprep.subr.mxu0 0.0
  %1557 = vmatpush2.msra.mxu0 0.0
  %1558 = vmatprep.subr.mxu0 0.0
  %1559 = vmatpush2.msra.mxu0 0.0
  %1560 = vmatprep.subr.mxu0 0.0
  %1561 = vmatpush2.msra.mxu0 0.0
  %1562 = vmatprep.subr.mxu0 0.0
  %1563 = vmatpush2.msra.mxu0 0.0
  %1564 = vmatprep.subr.mxu0 0.0
  %1565 = vmatpush2.msra.mxu0 0.0
  %1566 = vmatprep.subr.mxu0 0.0
  %1567 = vmatpush2.msra.mxu0 0.0
  %1568 = vmatprep.subr.mxu0 0.0
  %1569 = vmatpush2.msra.mxu0 0.0
  %1570 = vmatprep.subr.mxu0 0.0
  %1571 = vmatpush2.msra.mxu0 0.0
  %1572 = vmatprep.subr.mxu0 0.0
  %1573 = vmatpush2.msra.mxu0 0.0
  %1574 = vmatprep.mubr.f32.mxu0 0.0
  %1575 = vmatmul.mubr.f32.gmra.mxu0 %v1508
  %v1576 = vpop.f32.mrf.mxu0
  %v1577 = vadd.f32 0.0, %v1576
  %v1578 = vpop.f32.mrf.mxu0
  %1579 = vdwg.mxu0
  %v1581 = vrot.slane %v1577, 4
  %v1582 = vrot.slane %v1577, 5
  %v1583 = vrot.slane %v1577, 6
  %v1584 = vrot.slane %v1577, 7
  %v1585 = vrot.slane %v1577, 1
  %v1586 = vrot.slane %v1577, 2
  %v1587 = vrot.slane %v1577, 3
  %v1596 = vadd.f32 %v137, %v1581
  %v1597 = vadd.f32 %v142, %v1582
  %v1598 = vadd.f32 %v147, %v1583
  %v1599 = vadd.f32 %v152, %v1584
  %v1600 = vadd.f32 %v157, %v1577
  %v1601 = vadd.f32 %v162, %v1585
  %v1602 = vadd.f32 %v167, %v1586
  %v1603 = vadd.f32 %v172, %v1587
  %v1604 = vxor.u32 %v1596, 2147483648
  %v1605 = vxor.u32 %v1597, 2147483648
  %v1606 = vxor.u32 %v1598, 2147483648
  %v1607 = vxor.u32 %v1599, 2147483648
  %v1608 = vxor.u32 %v1600, 2147483648
  %v1609 = vxor.u32 %v1601, 2147483648
  %v1610 = vxor.u32 %v1602, 2147483648
  %v1611 = vxor.u32 %v1603, 2147483648
  %v1612 = vmul.f32 %v1604, 1.442695
  %v1613 = vpow.pop %v1612
  %v1614 = vmul.f32 %v1605, 1.442695
  %v1615 = vpow.pop %v1614
  %v1616 = vmul.f32 %v1606, 1.442695
  %v1617 = vpow.pop %v1616
  %v1618 = vmul.f32 %v1607, 1.442695
  %v1619 = vpow.pop %v1618
  %v1620 = vmul.f32 %v1608, 1.442695
  %v1621 = vpow.pop %v1620
  %v1622 = vmul.f32 %v1609, 1.442695
  %v1623 = vpow.pop %v1622
  %v1624 = vmul.f32 %v1610, 1.442695
  %v1625 = vpow.pop %v1624
  %v1626 = vmul.f32 %v1611, 1.442695
  %v1627 = vpow.pop %v1626
  %v1628 = vadd.f32 %v1613, 1.0
  %v1629 = vadd.f32 %v1615, 1.0
  %v1630 = vadd.f32 %v1617, 1.0
  %v1631 = vadd.f32 %v1619, 1.0
  %v1632 = vadd.f32 %v1621, 1.0
  %v1633 = vadd.f32 %v1623, 1.0
  %v1634 = vadd.f32 %v1625, 1.0
  %v1635 = vadd.f32 %v1627, 1.0
  %v1636 = vrcp.pop %v1628
  %v1637 = vmul.f32 1.0, %v1636
  %v1638 = vrcp.pop %v1629
  %v1639 = vmul.f32 1.0, %v1638
  %v1640 = vrcp.pop %v1630
  %v1641 = vmul.f32 1.0, %v1640
  %v1642 = vrcp.pop %v1631
  %v1643 = vmul.f32 1.0, %v1642
  %v1644 = vrcp.pop %v1632
  %v1645 = vmul.f32 1.0, %v1644
  %v1646 = vrcp.pop %v1633
  %v1647 = vmul.f32 1.0, %v1646
  %v1648 = vrcp.pop %v1634
  %v1649 = vmul.f32 1.0, %v1648
  %v1650 = vrcp.pop %v1635
  %v1651 = vmul.f32 1.0, %v1650
  %v1652 = vtanh.pop %v1596
  %v1653 = vtanh.pop %v1597
  %v1654 = vtanh.pop %v1598
  %v1655 = vtanh.pop %v1599
  %v1656 = vtanh.pop %v1600
  %v1657 = vtanh.pop %v1601
  %v1658 = vtanh.pop %v1602
  %v1659 = vtanh.pop %v1603
  %v1668 = vrot.slane %v1428, 7
  %v1669 = vrot.slane %v1429, 7
  %v1670 = vrot.slane %v1430, 7
  %v1671 = vrot.slane %v1431, 7
  %v1672 = vrot.slane %v1432, 7
  %v1673 = vrot.slane %v1433, 7
  %v1674 = vrot.slane %v1434, 7
  %v1675 = vrot.slane %v1435, 7
  %v1684 = vmul.f32 %v1637, %v1668
  %v1685 = vmul.f32 %v1639, %v1669
  %v1686 = vmul.f32 %v1641, %v1670
  %v1687 = vmul.f32 %v1643, %v1671
  %v1688 = vmul.f32 %v1645, %v1672
  %v1689 = vmul.f32 %v1647, %v1673
  %v1690 = vmul.f32 %v1649, %v1674
  %v1691 = vmul.f32 %v1651, %v1675
  %1700 = vrot.lane.b32.xlu0 %v1652, 32
  %v1701 = vpop.permute.xlu0 %1700
  %1702 = vrot.lane.b32.xlu0 %v1653, 32
  %v1703 = vpop.permute.xlu0 %1702
  %1704 = vrot.lane.b32.xlu0 %v1654, 32
  %v1705 = vpop.permute.xlu0 %1704
  %1706 = vrot.lane.b32.xlu0 %v1655, 32
  %v1707 = vpop.permute.xlu0 %1706
  %1708 = vrot.lane.b32.xlu0 %v1656, 32
  %v1709 = vpop.permute.xlu0 %1708
  %1710 = vrot.lane.b32.xlu0 %v1657, 32
  %v1711 = vpop.permute.xlu0 %1710
  %1712 = vrot.lane.b32.xlu0 %v1658, 32
  %v1713 = vpop.permute.xlu0 %1712
  %1714 = vrot.lane.b32.xlu0 %v1659, 32
  %v1715 = vpop.permute.xlu0 %1714
  %v1724 = vmul.f32 %v1637, %v1701
  %v1725 = vmul.f32 %v1639, %v1703
  %v1726 = vmul.f32 %v1641, %v1705
  %v1727 = vmul.f32 %v1643, %v1707
  %v1728 = vmul.f32 %v1645, %v1709
  %v1729 = vmul.f32 %v1647, %v1711
  %v1730 = vmul.f32 %v1649, %v1713
  %v1731 = vmul.f32 %v1651, %v1715
  %1740 = vrot.lane.b32.xlu0 %v1724, 32
  %v1741 = vpop.permute.xlu0 %1740
  %1742 = vrot.lane.b32.xlu0 %v1725, 32
  %v1743 = vpop.permute.xlu0 %1742
  %1744 = vrot.lane.b32.xlu0 %v1726, 32
  %v1745 = vpop.permute.xlu0 %1744
  %1746 = vrot.lane.b32.xlu0 %v1727, 32
  %v1747 = vpop.permute.xlu0 %1746
  %1748 = vrot.lane.b32.xlu0 %v1728, 32
  %v1749 = vpop.permute.xlu0 %1748
  %1750 = vrot.lane.b32.xlu0 %v1729, 32
  %v1751 = vpop.permute.xlu0 %1750
  %1752 = vrot.lane.b32.xlu0 %v1730, 32
  %v1753 = vpop.permute.xlu0 %1752
  %1754 = vrot.lane.b32.xlu0 %v1731, 32
  %v1755 = vpop.permute.xlu0 %1754
  %v1764 = vadd.f32 %v1684, %v1741
  %v1765 = vadd.f32 %v1685, %v1743
  %v1766 = vadd.f32 %v1686, %v1745
  %v1767 = vadd.f32 %v1687, %v1747
  %v1768 = vadd.f32 %v1688, %v1749
  %v1769 = vadd.f32 %v1689, %v1751
  %v1770 = vadd.f32 %v1690, %v1753
  %v1771 = vadd.f32 %v1691, %v1755
  %v1772 = vtanh.pop %v1764
  %v1773 = vtanh.pop %v1765
  %v1774 = vtanh.pop %v1766
  %v1775 = vtanh.pop %v1767
  %v1776 = vtanh.pop %v1768
  %v1777 = vtanh.pop %v1769
  %v1778 = vtanh.pop %v1770
  %v1779 = vtanh.pop %v1771
  %1788 = vrot.lane.b32.xlu0 %v1772, 32
  %v1789 = vpop.permute.xlu0 %1788
  %1790 = vrot.lane.b32.xlu0 %v1773, 32
  %v1791 = vpop.permute.xlu0 %1790
  %1792 = vrot.lane.b32.xlu0 %v1774, 32
  %v1793 = vpop.permute.xlu0 %1792
  %1794 = vrot.lane.b32.xlu0 %v1775, 32
  %v1795 = vpop.permute.xlu0 %1794
  %1796 = vrot.lane.b32.xlu0 %v1776, 32
  %v1797 = vpop.permute.xlu0 %1796
  %1798 = vrot.lane.b32.xlu0 %v1777, 32
  %v1799 = vpop.permute.xlu0 %1798
  %1800 = vrot.lane.b32.xlu0 %v1778, 32
  %v1801 = vpop.permute.xlu0 %1800
  %1802 = vrot.lane.b32.xlu0 %v1779, 32
  %v1803 = vpop.permute.xlu0 %1802
  %v1812 = vmul.f32 %v1637, %v1789
  %v1813 = vmul.f32 %v1639, %v1791
  %v1814 = vmul.f32 %v1641, %v1793
  %v1815 = vmul.f32 %v1643, %v1795
  %v1816 = vmul.f32 %v1645, %v1797
  %v1817 = vmul.f32 %v1647, %v1799
  %v1818 = vmul.f32 %v1649, %v1801
  %v1819 = vmul.f32 %v1651, %v1803
  %v1828 = vrot.slane %v1812, 4
  %v1829 = vrot.slane %v1813, 3
  %v1830 = vsel %vm478, %v1829, %v1828
  %v1831 = vrot.slane %v1814, 2
  %v1832 = vsel %vm481, %v1831, %v1830
  %v1833 = vrot.slane %v1815, 1
  %v1834 = vsel %vm484, %v1833, %v1832
  %v1835 = vsel %vm487, %v1816, %v1834
  %v1836 = vrot.slane %v1817, 7
  %v1837 = vsel %vm490, %v1836, %v1835
  %v1838 = vrot.slane %v1818, 6
  %v1839 = vsel %vm493, %v1838, %v1837
  %v1840 = vrot.slane %v1819, 5
  %v1841 = vsel %vm496, %v1840, %v1839
  %1842 = vrot.lane.b32.xlu0 %v1841, 64
  %v1843 = vpop.permute.xlu0 %1842
  %v1844 = vsel %vm179, %v1843, 0
  %1846 = vmatprep.subr.mxu0 0.0
  %1847 = vmatpush1.msra.mxu0 0.0
  %1848 = vmatprep.subr.mxu0 0.0
  %1849 = vmatpush1.msra.mxu0 0.0
  %1850 = vmatprep.subr.mxu0 0.0
  %1851 = vmatpush1.msra.mxu0 0.0
  %1852 = vmatprep.subr.mxu0 0.0
  %1853 = vmatpush1.msra.mxu0 0.0
  %1854 = vmatprep.subr.mxu0 0.0
  %1855 = vmatpush1.msra.mxu0 0.0
  %1856 = vmatprep.subr.mxu0 0.0
  %1857 = vmatpush1.msra.mxu0 0.0
  %1858 = vmatprep.subr.mxu0 0.0
  %1859 = vmatpush1.msra.mxu0 0.0
  %1860 = vmatprep.subr.mxu0 0.0
  %1861 = vmatpush1.msra.mxu0 0.0
  %1862 = vmatprep.subr.mxu0 0.0
  %1863 = vmatpush1.msra.mxu0 0.0
  %1864 = vmatprep.subr.mxu0 0.0
  %1865 = vmatpush1.msra.mxu0 0.0
  %1866 = vmatprep.subr.mxu0 0.0
  %1867 = vmatpush1.msra.mxu0 0.0
  %1868 = vmatprep.subr.mxu0 0.0
  %1869 = vmatpush1.msra.mxu0 0.0
  %1870 = vmatprep.subr.mxu0 0.0
  %1871 = vmatpush1.msra.mxu0 %v178
  %1872 = vmatprep.subr.mxu0 0.0
  %1873 = vmatpush1.msra.mxu0 %v177
  %1874 = vmatprep.subr.mxu0 0.0
  %1875 = vmatpush1.msra.mxu0 %v176
  %1876 = vmatprep.subr.mxu0 0.0
  %1877 = vmatpush1.msra.mxu0 %v175
  %1878 = vmatprep.subr.mxu0 0.0
  %1879 = vmatpush2.msra.mxu0 0.0
  %1880 = vmatprep.subr.mxu0 0.0
  %1881 = vmatpush2.msra.mxu0 0.0
  %1882 = vmatprep.subr.mxu0 0.0
  %1883 = vmatpush2.msra.mxu0 0.0
  %1884 = vmatprep.subr.mxu0 0.0
  %1885 = vmatpush2.msra.mxu0 0.0
  %1886 = vmatprep.subr.mxu0 0.0
  %1887 = vmatpush2.msra.mxu0 0.0
  %1888 = vmatprep.subr.mxu0 0.0
  %1889 = vmatpush2.msra.mxu0 0.0
  %1890 = vmatprep.subr.mxu0 0.0
  %1891 = vmatpush2.msra.mxu0 0.0
  %1892 = vmatprep.subr.mxu0 0.0
  %1893 = vmatpush2.msra.mxu0 0.0
  %1894 = vmatprep.subr.mxu0 0.0
  %1895 = vmatpush2.msra.mxu0 0.0
  %1896 = vmatprep.subr.mxu0 0.0
  %1897 = vmatpush2.msra.mxu0 0.0
  %1898 = vmatprep.subr.mxu0 0.0
  %1899 = vmatpush2.msra.mxu0 0.0
  %1900 = vmatprep.subr.mxu0 0.0
  %1901 = vmatpush2.msra.mxu0 0.0
  %1902 = vmatprep.subr.mxu0 0.0
  %1903 = vmatpush2.msra.mxu0 0.0
  %1904 = vmatprep.subr.mxu0 0.0
  %1905 = vmatpush2.msra.mxu0 0.0
  %1906 = vmatprep.subr.mxu0 0.0
  %1907 = vmatpush2.msra.mxu0 0.0
  %1908 = vmatprep.subr.mxu0 0.0
  %1909 = vmatpush2.msra.mxu0 0.0
  %1910 = vmatprep.mubr.f32.mxu0 0.0
  %1911 = vmatmul.mubr.f32.gmra.mxu0 %v1844
  %v1912 = vpop.f32.mrf.mxu0
  %v1913 = vadd.f32 0.0, %v1912
  %v1914 = vpop.f32.mrf.mxu0
  %1915 = vdwg.mxu0
  %v1917 = vrot.slane %v1913, 3
  %v1918 = vrot.slane %v1913, 4
  %v1919 = vrot.slane %v1913, 5
  %v1920 = vrot.slane %v1913, 6
  %v1921 = vrot.slane %v1913, 7
  %v1922 = vrot.slane %v1913, 1
  %v1923 = vrot.slane %v1913, 2
  %v1932 = vadd.f32 %v137, %v1917
  %v1933 = vadd.f32 %v142, %v1918
  %v1934 = vadd.f32 %v147, %v1919
  %v1935 = vadd.f32 %v152, %v1920
  %v1936 = vadd.f32 %v157, %v1921
  %v1937 = vadd.f32 %v162, %v1913
  %v1938 = vadd.f32 %v167, %v1922
  %v1939 = vadd.f32 %v172, %v1923
  %v1940 = vxor.u32 %v1932, 2147483648
  %v1941 = vxor.u32 %v1933, 2147483648
  %v1942 = vxor.u32 %v1934, 2147483648
  %v1943 = vxor.u32 %v1935, 2147483648
  %v1944 = vxor.u32 %v1936, 2147483648
  %v1945 = vxor.u32 %v1937, 2147483648
  %v1946 = vxor.u32 %v1938, 2147483648
  %v1947 = vxor.u32 %v1939, 2147483648
  %v1948 = vmul.f32 %v1940, 1.442695
  %v1949 = vpow.pop %v1948
  %v1950 = vmul.f32 %v1941, 1.442695
  %v1951 = vpow.pop %v1950
  %v1952 = vmul.f32 %v1942, 1.442695
  %v1953 = vpow.pop %v1952
  %v1954 = vmul.f32 %v1943, 1.442695
  %v1955 = vpow.pop %v1954
  %v1956 = vmul.f32 %v1944, 1.442695
  %v1957 = vpow.pop %v1956
  %v1958 = vmul.f32 %v1945, 1.442695
  %v1959 = vpow.pop %v1958
  %v1960 = vmul.f32 %v1946, 1.442695
  %v1961 = vpow.pop %v1960
  %v1962 = vmul.f32 %v1947, 1.442695
  %v1963 = vpow.pop %v1962
  %v1964 = vadd.f32 %v1949, 1.0
  %v1965 = vadd.f32 %v1951, 1.0
  %v1966 = vadd.f32 %v1953, 1.0
  %v1967 = vadd.f32 %v1955, 1.0
  %v1968 = vadd.f32 %v1957, 1.0
  %v1969 = vadd.f32 %v1959, 1.0
  %v1970 = vadd.f32 %v1961, 1.0
  %v1971 = vadd.f32 %v1963, 1.0
  %v1972 = vrcp.pop %v1964
  %v1973 = vmul.f32 1.0, %v1972
  %v1974 = vrcp.pop %v1965
  %v1975 = vmul.f32 1.0, %v1974
  %v1976 = vrcp.pop %v1966
  %v1977 = vmul.f32 1.0, %v1976
  %v1978 = vrcp.pop %v1967
  %v1979 = vmul.f32 1.0, %v1978
  %v1980 = vrcp.pop %v1968
  %v1981 = vmul.f32 1.0, %v1980
  %v1982 = vrcp.pop %v1969
  %v1983 = vmul.f32 1.0, %v1982
  %v1984 = vrcp.pop %v1970
  %v1985 = vmul.f32 1.0, %v1984
  %v1986 = vrcp.pop %v1971
  %v1987 = vmul.f32 1.0, %v1986
  %v1988 = vtanh.pop %v1932
  %v1989 = vtanh.pop %v1933
  %v1990 = vtanh.pop %v1934
  %v1991 = vtanh.pop %v1935
  %v1992 = vtanh.pop %v1936
  %v1993 = vtanh.pop %v1937
  %v1994 = vtanh.pop %v1938
  %v1995 = vtanh.pop %v1939
  %v2004 = vrot.slane %v1764, 7
  %v2005 = vrot.slane %v1765, 7
  %v2006 = vrot.slane %v1766, 7
  %v2007 = vrot.slane %v1767, 7
  %v2008 = vrot.slane %v1768, 7
  %v2009 = vrot.slane %v1769, 7
  %v2010 = vrot.slane %v1770, 7
  %v2011 = vrot.slane %v1771, 7
  %v2020 = vmul.f32 %v1973, %v2004
  %v2021 = vmul.f32 %v1975, %v2005
  %v2022 = vmul.f32 %v1977, %v2006
  %v2023 = vmul.f32 %v1979, %v2007
  %v2024 = vmul.f32 %v1981, %v2008
  %v2025 = vmul.f32 %v1983, %v2009
  %v2026 = vmul.f32 %v1985, %v2010
  %v2027 = vmul.f32 %v1987, %v2011
  %2036 = vrot.lane.b32.xlu0 %v1988, 32
  %v2037 = vpop.permute.xlu0 %2036
  %2038 = vrot.lane.b32.xlu0 %v1989, 32
  %v2039 = vpop.permute.xlu0 %2038
  %2040 = vrot.lane.b32.xlu0 %v1990, 32
  %v2041 = vpop.permute.xlu0 %2040
  %2042 = vrot.lane.b32.xlu0 %v1991, 32
  %v2043 = vpop.permute.xlu0 %2042
  %2044 = vrot.lane.b32.xlu0 %v1992, 32
  %v2045 = vpop.permute.xlu0 %2044
  %2046 = vrot.lane.b32.xlu0 %v1993, 32
  %v2047 = vpop.permute.xlu0 %2046
  %2048 = vrot.lane.b32.xlu0 %v1994, 32
  %v2049 = vpop.permute.xlu0 %2048
  %2050 = vrot.lane.b32.xlu0 %v1995, 32
  %v2051 = vpop.permute.xlu0 %2050
  %v2060 = vmul.f32 %v1973, %v2037
  %v2061 = vmul.f32 %v1975, %v2039
  %v2062 = vmul.f32 %v1977, %v2041
  %v2063 = vmul.f32 %v1979, %v2043
  %v2064 = vmul.f32 %v1981, %v2045
  %v2065 = vmul.f32 %v1983, %v2047
  %v2066 = vmul.f32 %v1985, %v2049
  %v2067 = vmul.f32 %v1987, %v2051
  %2076 = vrot.lane.b32.xlu0 %v2060, 32
  %v2077 = vpop.permute.xlu0 %2076
  %2078 = vrot.lane.b32.xlu0 %v2061, 32
  %v2079 = vpop.permute.xlu0 %2078
  %2080 = vrot.lane.b32.xlu0 %v2062, 32
  %v2081 = vpop.permute.xlu0 %2080
  %2082 = vrot.lane.b32.xlu0 %v2063, 32
  %v2083 = vpop.permute.xlu0 %2082
  %2084 = vrot.lane.b32.xlu0 %v2064, 32
  %v2085 = vpop.permute.xlu0 %2084
  %2086 = vrot.lane.b32.xlu0 %v2065, 32
  %v2087 = vpop.permute.xlu0 %2086
  %2088 = vrot.lane.b32.xlu0 %v2066, 32
  %v2089 = vpop.permute.xlu0 %2088
  %2090 = vrot.lane.b32.xlu0 %v2067, 32
  %v2091 = vpop.permute.xlu0 %2090
  %v2100 = vadd.f32 %v2020, %v2077
  %v2101 = vadd.f32 %v2021, %v2079
  %v2102 = vadd.f32 %v2022, %v2081
  %v2103 = vadd.f32 %v2023, %v2083
  %v2104 = vadd.f32 %v2024, %v2085
  %v2105 = vadd.f32 %v2025, %v2087
  %v2106 = vadd.f32 %v2026, %v2089
  %v2107 = vadd.f32 %v2027, %v2091
  %v2108 = vtanh.pop %v2100
  %v2109 = vtanh.pop %v2101
  %v2110 = vtanh.pop %v2102
  %v2111 = vtanh.pop %v2103
  %v2112 = vtanh.pop %v2104
  %v2113 = vtanh.pop %v2105
  %v2114 = vtanh.pop %v2106
  %v2115 = vtanh.pop %v2107
  %2124 = vrot.lane.b32.xlu0 %v2108, 32
  %v2125 = vpop.permute.xlu0 %2124
  %2126 = vrot.lane.b32.xlu0 %v2109, 32
  %v2127 = vpop.permute.xlu0 %2126
  %2128 = vrot.lane.b32.xlu0 %v2110, 32
  %v2129 = vpop.permute.xlu0 %2128
  %2130 = vrot.lane.b32.xlu0 %v2111, 32
  %v2131 = vpop.permute.xlu0 %2130
  %2132 = vrot.lane.b32.xlu0 %v2112, 32
  %v2133 = vpop.permute.xlu0 %2132
  %2134 = vrot.lane.b32.xlu0 %v2113, 32
  %v2135 = vpop.permute.xlu0 %2134
  %2136 = vrot.lane.b32.xlu0 %v2114, 32
  %v2137 = vpop.permute.xlu0 %2136
  %2138 = vrot.lane.b32.xlu0 %v2115, 32
  %v2139 = vpop.permute.xlu0 %2138
  %v2148 = vmul.f32 %v1973, %v2125
  %v2149 = vmul.f32 %v1975, %v2127
  %v2150 = vmul.f32 %v1977, %v2129
  %v2151 = vmul.f32 %v1979, %v2131
  %v2152 = vmul.f32 %v1981, %v2133
  %v2153 = vmul.f32 %v1983, %v2135
  %v2154 = vmul.f32 %v1985, %v2137
  %v2155 = vmul.f32 %v1987, %v2139
  %v2164 = vrot.slane %v2148, 5
  %v2165 = vrot.slane %v2149, 4
  %v2166 = vsel %vm478, %v2165, %v2164
  %v2167 = vrot.slane %v2150, 3
  %v2168 = vsel %vm481, %v2167, %v2166
  %v2169 = vrot.slane %v2151, 2
  %v2170 = vsel %vm484, %v2169, %v2168
  %v2171 = vrot.slane %v2152, 1
  %v2172 = vsel %vm487, %v2171, %v2170
  %v2173 = vsel %vm490, %v2153, %v2172
  %v2174 = vrot.slane %v2154, 7
  %v2175 = vsel %vm493, %v2174, %v2173
  %v2176 = vrot.slane %v2155, 6
  %v2177 = vsel %vm496, %v2176, %v2175
  %2178 = vrot.lane.b32.xlu0 %v2177, 64
  %v2179 = vpop.permute.xlu0 %2178
  %v2180 = vsel %vm179, %v2179, 0
  %2182 = vmatprep.subr.mxu0 0.0
  %2183 = vmatpush1.msra.mxu0 0.0
  %2184 = vmatprep.subr.mxu0 0.0
  %2185 = vmatpush1.msra.mxu0 0.0
  %2186 = vmatprep.subr.mxu0 0.0
  %2187 = vmatpush1.msra.mxu0 0.0
  %2188 = vmatprep.subr.mxu0 0.0
  %2189 = vmatpush1.msra.mxu0 0.0
  %2190 = vmatprep.subr.mxu0 0.0
  %2191 = vmatpush1.msra.mxu0 0.0
  %2192 = vmatprep.subr.mxu0 0.0
  %2193 = vmatpush1.msra.mxu0 0.0
  %2194 = vmatprep.subr.mxu0 0.0
  %2195 = vmatpush1.msra.mxu0 0.0
  %2196 = vmatprep.subr.mxu0 0.0
  %2197 = vmatpush1.msra.mxu0 0.0
  %2198 = vmatprep.subr.mxu0 0.0
  %2199 = vmatpush1.msra.mxu0 0.0
  %2200 = vmatprep.subr.mxu0 0.0
  %2201 = vmatpush1.msra.mxu0 0.0
  %2202 = vmatprep.subr.mxu0 0.0
  %2203 = vmatpush1.msra.mxu0 0.0
  %2204 = vmatprep.subr.mxu0 0.0
  %2205 = vmatpush1.msra.mxu0 0.0
  %2206 = vmatprep.subr.mxu0 0.0
  %2207 = vmatpush1.msra.mxu0 %v178
  %2208 = vmatprep.subr.mxu0 0.0
  %2209 = vmatpush1.msra.mxu0 %v177
  %2210 = vmatprep.subr.mxu0 0.0
  %2211 = vmatpush1.msra.mxu0 %v176
  %2212 = vmatprep.subr.mxu0 0.0
  %2213 = vmatpush1.msra.mxu0 %v175
  %2214 = vmatprep.subr.mxu0 0.0
  %2215 = vmatpush2.msra.mxu0 0.0
  %2216 = vmatprep.subr.mxu0 0.0
  %2217 = vmatpush2.msra.mxu0 0.0
  %2218 = vmatprep.subr.mxu0 0.0
  %2219 = vmatpush2.msra.mxu0 0.0
  %2220 = vmatprep.subr.mxu0 0.0
  %2221 = vmatpush2.msra.mxu0 0.0
  %2222 = vmatprep.subr.mxu0 0.0
  %2223 = vmatpush2.msra.mxu0 0.0
  %2224 = vmatprep.subr.mxu0 0.0
  %2225 = vmatpush2.msra.mxu0 0.0
  %2226 = vmatprep.subr.mxu0 0.0
  %2227 = vmatpush2.msra.mxu0 0.0
  %2228 = vmatprep.subr.mxu0 0.0
  %2229 = vmatpush2.msra.mxu0 0.0
  %2230 = vmatprep.subr.mxu0 0.0
  %2231 = vmatpush2.msra.mxu0 0.0
  %2232 = vmatprep.subr.mxu0 0.0
  %2233 = vmatpush2.msra.mxu0 0.0
  %2234 = vmatprep.subr.mxu0 0.0
  %2235 = vmatpush2.msra.mxu0 0.0
  %2236 = vmatprep.subr.mxu0 0.0
  %2237 = vmatpush2.msra.mxu0 0.0
  %2238 = vmatprep.subr.mxu0 0.0
  %2239 = vmatpush2.msra.mxu0 0.0
  %2240 = vmatprep.subr.mxu0 0.0
  %2241 = vmatpush2.msra.mxu0 0.0
  %2242 = vmatprep.subr.mxu0 0.0
  %2243 = vmatpush2.msra.mxu0 0.0
  %2244 = vmatprep.subr.mxu0 0.0
  %2245 = vmatpush2.msra.mxu0 0.0
  %2246 = vmatprep.mubr.f32.mxu0 0.0
  %2247 = vmatmul.mubr.f32.gmra.mxu0 %v2180
  %v2248 = vpop.f32.mrf.mxu0
  %v2249 = vadd.f32 0.0, %v2248
  %v2250 = vpop.f32.mrf.mxu0
  %2251 = vdwg.mxu0
  %v2253 = vrot.slane %v2249, 2
  %v2254 = vrot.slane %v2249, 3
  %v2255 = vrot.slane %v2249, 4
  %v2256 = vrot.slane %v2249, 5
  %v2257 = vrot.slane %v2249, 6
  %v2258 = vrot.slane %v2249, 7
  %v2259 = vrot.slane %v2249, 1
  %v2268 = vadd.f32 %v137, %v2253
  %v2269 = vadd.f32 %v142, %v2254
  %v2270 = vadd.f32 %v147, %v2255
  %v2271 = vadd.f32 %v152, %v2256
  %v2272 = vadd.f32 %v157, %v2257
  %v2273 = vadd.f32 %v162, %v2258
  %v2274 = vadd.f32 %v167, %v2249
  %v2275 = vadd.f32 %v172, %v2259
  %v2276 = vxor.u32 %v2268, 2147483648
  %v2277 = vxor.u32 %v2269, 2147483648
  %v2278 = vxor.u32 %v2270, 2147483648
  %v2279 = vxor.u32 %v2271, 2147483648
  %v2280 = vxor.u32 %v2272, 2147483648
  %v2281 = vxor.u32 %v2273, 2147483648
  %v2282 = vxor.u32 %v2274, 2147483648
  %v2283 = vxor.u32 %v2275, 2147483648
  %v2284 = vmul.f32 %v2276, 1.442695
  %v2285 = vpow.pop %v2284
  %v2286 = vmul.f32 %v2277, 1.442695
  %v2287 = vpow.pop %v2286
  %v2288 = vmul.f32 %v2278, 1.442695
  %v2289 = vpow.pop %v2288
  %v2290 = vmul.f32 %v2279, 1.442695
  %v2291 = vpow.pop %v2290
  %v2292 = vmul.f32 %v2280, 1.442695
  %v2293 = vpow.pop %v2292
  %v2294 = vmul.f32 %v2281, 1.442695
  %v2295 = vpow.pop %v2294
  %v2296 = vmul.f32 %v2282, 1.442695
  %v2297 = vpow.pop %v2296
  %v2298 = vmul.f32 %v2283, 1.442695
  %v2299 = vpow.pop %v2298
  %v2300 = vadd.f32 %v2285, 1.0
  %v2301 = vadd.f32 %v2287, 1.0
  %v2302 = vadd.f32 %v2289, 1.0
  %v2303 = vadd.f32 %v2291, 1.0
  %v2304 = vadd.f32 %v2293, 1.0
  %v2305 = vadd.f32 %v2295, 1.0
  %v2306 = vadd.f32 %v2297, 1.0
  %v2307 = vadd.f32 %v2299, 1.0
  %v2308 = vrcp.pop %v2300
  %v2309 = vmul.f32 1.0, %v2308
  %v2310 = vrcp.pop %v2301
  %v2311 = vmul.f32 1.0, %v2310
  %v2312 = vrcp.pop %v2302
  %v2313 = vmul.f32 1.0, %v2312
  %v2314 = vrcp.pop %v2303
  %v2315 = vmul.f32 1.0, %v2314
  %v2316 = vrcp.pop %v2304
  %v2317 = vmul.f32 1.0, %v2316
  %v2318 = vrcp.pop %v2305
  %v2319 = vmul.f32 1.0, %v2318
  %v2320 = vrcp.pop %v2306
  %v2321 = vmul.f32 1.0, %v2320
  %v2322 = vrcp.pop %v2307
  %v2323 = vmul.f32 1.0, %v2322
  %v2324 = vtanh.pop %v2268
  %v2325 = vtanh.pop %v2269
  %v2326 = vtanh.pop %v2270
  %v2327 = vtanh.pop %v2271
  %v2328 = vtanh.pop %v2272
  %v2329 = vtanh.pop %v2273
  %v2330 = vtanh.pop %v2274
  %v2331 = vtanh.pop %v2275
  %v2340 = vrot.slane %v2100, 7
  %v2341 = vrot.slane %v2101, 7
  %v2342 = vrot.slane %v2102, 7
  %v2343 = vrot.slane %v2103, 7
  %v2344 = vrot.slane %v2104, 7
  %v2345 = vrot.slane %v2105, 7
  %v2346 = vrot.slane %v2106, 7
  %v2347 = vrot.slane %v2107, 7
  %v2356 = vmul.f32 %v2309, %v2340
  %v2357 = vmul.f32 %v2311, %v2341
  %v2358 = vmul.f32 %v2313, %v2342
  %v2359 = vmul.f32 %v2315, %v2343
  %v2360 = vmul.f32 %v2317, %v2344
  %v2361 = vmul.f32 %v2319, %v2345
  %v2362 = vmul.f32 %v2321, %v2346
  %v2363 = vmul.f32 %v2323, %v2347
  %2372 = vrot.lane.b32.xlu0 %v2324, 32
  %v2373 = vpop.permute.xlu0 %2372
  %2374 = vrot.lane.b32.xlu0 %v2325, 32
  %v2375 = vpop.permute.xlu0 %2374
  %2376 = vrot.lane.b32.xlu0 %v2326, 32
  %v2377 = vpop.permute.xlu0 %2376
  %2378 = vrot.lane.b32.xlu0 %v2327, 32
  %v2379 = vpop.permute.xlu0 %2378
  %2380 = vrot.lane.b32.xlu0 %v2328, 32
  %v2381 = vpop.permute.xlu0 %2380
  %2382 = vrot.lane.b32.xlu0 %v2329, 32
  %v2383 = vpop.permute.xlu0 %2382
  %2384 = vrot.lane.b32.xlu0 %v2330, 32
  %v2385 = vpop.permute.xlu0 %2384
  %2386 = vrot.lane.b32.xlu0 %v2331, 32
  %v2387 = vpop.permute.xlu0 %2386
  %v2396 = vmul.f32 %v2309, %v2373
  %v2397 = vmul.f32 %v2311, %v2375
  %v2398 = vmul.f32 %v2313, %v2377
  %v2399 = vmul.f32 %v2315, %v2379
  %v2400 = vmul.f32 %v2317, %v2381
  %v2401 = vmul.f32 %v2319, %v2383
  %v2402 = vmul.f32 %v2321, %v2385
  %v2403 = vmul.f32 %v2323, %v2387
  %2412 = vrot.lane.b32.xlu0 %v2396, 32
  %v2413 = vpop.permute.xlu0 %2412
  %2414 = vrot.lane.b32.xlu0 %v2397, 32
  %v2415 = vpop.permute.xlu0 %2414
  %2416 = vrot.lane.b32.xlu0 %v2398, 32
  %v2417 = vpop.permute.xlu0 %2416
  %2418 = vrot.lane.b32.xlu0 %v2399, 32
  %v2419 = vpop.permute.xlu0 %2418
  %2420 = vrot.lane.b32.xlu0 %v2400, 32
  %v2421 = vpop.permute.xlu0 %2420
  %2422 = vrot.lane.b32.xlu0 %v2401, 32
  %v2423 = vpop.permute.xlu0 %2422
  %2424 = vrot.lane.b32.xlu0 %v2402, 32
  %v2425 = vpop.permute.xlu0 %2424
  %2426 = vrot.lane.b32.xlu0 %v2403, 32
  %v2427 = vpop.permute.xlu0 %2426
  %v2436 = vadd.f32 %v2356, %v2413
  %v2437 = vadd.f32 %v2357, %v2415
  %v2438 = vadd.f32 %v2358, %v2417
  %v2439 = vadd.f32 %v2359, %v2419
  %v2440 = vadd.f32 %v2360, %v2421
  %v2441 = vadd.f32 %v2361, %v2423
  %v2442 = vadd.f32 %v2362, %v2425
  %v2443 = vadd.f32 %v2363, %v2427
  %v2444 = vtanh.pop %v2436
  %v2445 = vtanh.pop %v2437
  %v2446 = vtanh.pop %v2438
  %v2447 = vtanh.pop %v2439
  %v2448 = vtanh.pop %v2440
  %v2449 = vtanh.pop %v2441
  %v2450 = vtanh.pop %v2442
  %v2451 = vtanh.pop %v2443
  %2460 = vrot.lane.b32.xlu0 %v2444, 32
  %v2461 = vpop.permute.xlu0 %2460
  %2462 = vrot.lane.b32.xlu0 %v2445, 32
  %v2463 = vpop.permute.xlu0 %2462
  %2464 = vrot.lane.b32.xlu0 %v2446, 32
  %v2465 = vpop.permute.xlu0 %2464
  %2466 = vrot.lane.b32.xlu0 %v2447, 32
  %v2467 = vpop.permute.xlu0 %2466
  %2468 = vrot.lane.b32.xlu0 %v2448, 32
  %v2469 = vpop.permute.xlu0 %2468
  %2470 = vrot.lane.b32.xlu0 %v2449, 32
  %v2471 = vpop.permute.xlu0 %2470
  %2472 = vrot.lane.b32.xlu0 %v2450, 32
  %v2473 = vpop.permute.xlu0 %2472
  %2474 = vrot.lane.b32.xlu0 %v2451, 32
  %v2475 = vpop.permute.xlu0 %2474
  %v2484 = vmul.f32 %v2309, %v2461
  %v2485 = vmul.f32 %v2311, %v2463
  %v2486 = vmul.f32 %v2313, %v2465
  %v2487 = vmul.f32 %v2315, %v2467
  %v2488 = vmul.f32 %v2317, %v2469
  %v2489 = vmul.f32 %v2319, %v2471
  %v2490 = vmul.f32 %v2321, %v2473
  %v2491 = vmul.f32 %v2323, %v2475
  %v2500 = vrot.slane %v2484, 6
  %v2501 = vrot.slane %v2485, 5
  %v2502 = vsel %vm478, %v2501, %v2500
  %v2503 = vrot.slane %v2486, 4
  %v2504 = vsel %vm481, %v2503, %v2502
  %v2505 = vrot.slane %v2487, 3
  %v2506 = vsel %vm484, %v2505, %v2504
  %v2507 = vrot.slane %v2488, 2
  %v2508 = vsel %vm487, %v2507, %v2506
  %v2509 = vrot.slane %v2489, 1
  %v2510 = vsel %vm490, %v2509, %v2508
  %v2511 = vsel %vm493, %v2490, %v2510
  %v2512 = vrot.slane %v2491, 7
  %v2513 = vsel %vm496, %v2512, %v2511
  %2514 = vrot.lane.b32.xlu0 %v2513, 64
  %v2515 = vpop.permute.xlu0 %2514
  %v2516 = vsel %vm179, %v2515, 0
  %2518 = vmatprep.subr.mxu0 0.0
  %2519 = vmatpush1.msra.mxu0 0.0
  %2520 = vmatprep.subr.mxu0 0.0
  %2521 = vmatpush1.msra.mxu0 0.0
  %2522 = vmatprep.subr.mxu0 0.0
  %2523 = vmatpush1.msra.mxu0 0.0
  %2524 = vmatprep.subr.mxu0 0.0
  %2525 = vmatpush1.msra.mxu0 0.0
  %2526 = vmatprep.subr.mxu0 0.0
  %2527 = vmatpush1.msra.mxu0 0.0
  %2528 = vmatprep.subr.mxu0 0.0
  %2529 = vmatpush1.msra.mxu0 0.0
  %2530 = vmatprep.subr.mxu0 0.0
  %2531 = vmatpush1.msra.mxu0 0.0
  %2532 = vmatprep.subr.mxu0 0.0
  %2533 = vmatpush1.msra.mxu0 0.0
  %2534 = vmatprep.subr.mxu0 0.0
  %2535 = vmatpush1.msra.mxu0 0.0
  %2536 = vmatprep.subr.mxu0 0.0
  %2537 = vmatpush1.msra.mxu0 0.0
  %2538 = vmatprep.subr.mxu0 0.0
  %2539 = vmatpush1.msra.mxu0 0.0
  %2540 = vmatprep.subr.mxu0 0.0
  %2541 = vmatpush1.msra.mxu0 0.0
  %2542 = vmatprep.subr.mxu0 0.0
  %2543 = vmatpush1.msra.mxu0 %v178
  %2544 = vmatprep.subr.mxu0 0.0
  %2545 = vmatpush1.msra.mxu0 %v177
  %2546 = vmatprep.subr.mxu0 0.0
  %2547 = vmatpush1.msra.mxu0 %v176
  %2548 = vmatprep.subr.mxu0 0.0
  %2549 = vmatpush1.msra.mxu0 %v175
  %2550 = vmatprep.subr.mxu0 0.0
  %2551 = vmatpush2.msra.mxu0 0.0
  %2552 = vmatprep.subr.mxu0 0.0
  %2553 = vmatpush2.msra.mxu0 0.0
  %2554 = vmatprep.subr.mxu0 0.0
  %2555 = vmatpush2.msra.mxu0 0.0
  %2556 = vmatprep.subr.mxu0 0.0
  %2557 = vmatpush2.msra.mxu0 0.0
  %2558 = vmatprep.subr.mxu0 0.0
  %2559 = vmatpush2.msra.mxu0 0.0
  %2560 = vmatprep.subr.mxu0 0.0
  %2561 = vmatpush2.msra.mxu0 0.0
  %2562 = vmatprep.subr.mxu0 0.0
  %2563 = vmatpush2.msra.mxu0 0.0
  %2564 = vmatprep.subr.mxu0 0.0
  %2565 = vmatpush2.msra.mxu0 0.0
  %2566 = vmatprep.subr.mxu0 0.0
  %2567 = vmatpush2.msra.mxu0 0.0
  %2568 = vmatprep.subr.mxu0 0.0
  %2569 = vmatpush2.msra.mxu0 0.0
  %2570 = vmatprep.subr.mxu0 0.0
  %2571 = vmatpush2.msra.mxu0 0.0
  %2572 = vmatprep.subr.mxu0 0.0
  %2573 = vmatpush2.msra.mxu0 0.0
  %2574 = vmatprep.subr.mxu0 0.0
  %2575 = vmatpush2.msra.mxu0 0.0
  %2576 = vmatprep.subr.mxu0 0.0
  %2577 = vmatpush2.msra.mxu0 0.0
  %2578 = vmatprep.subr.mxu0 0.0
  %2579 = vmatpush2.msra.mxu0 0.0
  %2580 = vmatprep.subr.mxu0 0.0
  %2581 = vmatpush2.msra.mxu0 0.0
  %2582 = vmatprep.mubr.f32.mxu0 0.0
  %2583 = vmatmul.mubr.f32.gmra.mxu0 %v2516
  %v2584 = vpop.f32.mrf.mxu0
  %v2585 = vadd.f32 0.0, %v2584
  %v2586 = vpop.f32.mrf.mxu0
  %2587 = vdwg.mxu0
  %v2589 = vrot.slane %v2585, 1
  %v2590 = vrot.slane %v2585, 2
  %v2591 = vrot.slane %v2585, 3
  %v2592 = vrot.slane %v2585, 4
  %v2593 = vrot.slane %v2585, 5
  %v2594 = vrot.slane %v2585, 6
  %v2595 = vrot.slane %v2585, 7
  %v2604 = vadd.f32 %v137, %v2589
  %v2605 = vadd.f32 %v142, %v2590
  %v2606 = vadd.f32 %v147, %v2591
  %v2607 = vadd.f32 %v152, %v2592
  %v2608 = vadd.f32 %v157, %v2593
  %v2609 = vadd.f32 %v162, %v2594
  %v2610 = vadd.f32 %v167, %v2595
  %v2611 = vadd.f32 %v172, %v2585
  %v2612 = vxor.u32 %v2604, 2147483648
  %v2613 = vxor.u32 %v2605, 2147483648
  %v2614 = vxor.u32 %v2606, 2147483648
  %v2615 = vxor.u32 %v2607, 2147483648
  %v2616 = vxor.u32 %v2608, 2147483648
  %v2617 = vxor.u32 %v2609, 2147483648
  %v2618 = vxor.u32 %v2610, 2147483648
  %v2619 = vxor.u32 %v2611, 2147483648
  %v2620 = vmul.f32 %v2612, 1.442695
  %v2621 = vpow.pop %v2620
  %v2622 = vmul.f32 %v2613, 1.442695
  %v2623 = vpow.pop %v2622
  %v2624 = vmul.f32 %v2614, 1.442695
  %v2625 = vpow.pop %v2624
  %v2626 = vmul.f32 %v2615, 1.442695
  %v2627 = vpow.pop %v2626
  %v2628 = vmul.f32 %v2616, 1.442695
  %v2629 = vpow.pop %v2628
  %v2630 = vmul.f32 %v2617, 1.442695
  %v2631 = vpow.pop %v2630
  %v2632 = vmul.f32 %v2618, 1.442695
  %v2633 = vpow.pop %v2632
  %v2634 = vmul.f32 %v2619, 1.442695
  %v2635 = vpow.pop %v2634
  %v2636 = vadd.f32 %v2621, 1.0
  %v2637 = vadd.f32 %v2623, 1.0
  %v2638 = vadd.f32 %v2625, 1.0
  %v2639 = vadd.f32 %v2627, 1.0
  %v2640 = vadd.f32 %v2629, 1.0
  %v2641 = vadd.f32 %v2631, 1.0
  %v2642 = vadd.f32 %v2633, 1.0
  %v2643 = vadd.f32 %v2635, 1.0
  %v2644 = vrcp.pop %v2636
  %v2645 = vmul.f32 1.0, %v2644
  %v2646 = vrcp.pop %v2637
  %v2647 = vmul.f32 1.0, %v2646
  %v2648 = vrcp.pop %v2638
  %v2649 = vmul.f32 1.0, %v2648
  %v2650 = vrcp.pop %v2639
  %v2651 = vmul.f32 1.0, %v2650
  %v2652 = vrcp.pop %v2640
  %v2653 = vmul.f32 1.0, %v2652
  %v2654 = vrcp.pop %v2641
  %v2655 = vmul.f32 1.0, %v2654
  %v2656 = vrcp.pop %v2642
  %v2657 = vmul.f32 1.0, %v2656
  %v2658 = vrcp.pop %v2643
  %v2659 = vmul.f32 1.0, %v2658
  %v2660 = vtanh.pop %v2604
  %v2661 = vtanh.pop %v2605
  %v2662 = vtanh.pop %v2606
  %v2663 = vtanh.pop %v2607
  %v2664 = vtanh.pop %v2608
  %v2665 = vtanh.pop %v2609
  %v2666 = vtanh.pop %v2610
  %v2667 = vtanh.pop %v2611
  %v2676 = vrot.slane %v2436, 7
  %v2677 = vrot.slane %v2437, 7
  %v2678 = vrot.slane %v2438, 7
  %v2679 = vrot.slane %v2439, 7
  %v2680 = vrot.slane %v2440, 7
  %v2681 = vrot.slane %v2441, 7
  %v2682 = vrot.slane %v2442, 7
  %v2683 = vrot.slane %v2443, 7
  %v2692 = vmul.f32 %v2645, %v2676
  %v2693 = vmul.f32 %v2647, %v2677
  %v2694 = vmul.f32 %v2649, %v2678
  %v2695 = vmul.f32 %v2651, %v2679
  %v2696 = vmul.f32 %v2653, %v2680
  %v2697 = vmul.f32 %v2655, %v2681
  %v2698 = vmul.f32 %v2657, %v2682
  %v2699 = vmul.f32 %v2659, %v2683
  %2708 = vrot.lane.b32.xlu0 %v2660, 32
  %v2709 = vpop.permute.xlu0 %2708
  %2710 = vrot.lane.b32.xlu0 %v2661, 32
  %v2711 = vpop.permute.xlu0 %2710
  %2712 = vrot.lane.b32.xlu0 %v2662, 32
  %v2713 = vpop.permute.xlu0 %2712
  %2714 = vrot.lane.b32.xlu0 %v2663, 32
  %v2715 = vpop.permute.xlu0 %2714
  %2716 = vrot.lane.b32.xlu0 %v2664, 32
  %v2717 = vpop.permute.xlu0 %2716
  %2718 = vrot.lane.b32.xlu0 %v2665, 32
  %v2719 = vpop.permute.xlu0 %2718
  %2720 = vrot.lane.b32.xlu0 %v2666, 32
  %v2721 = vpop.permute.xlu0 %2720
  %2722 = vrot.lane.b32.xlu0 %v2667, 32
  %v2723 = vpop.permute.xlu0 %2722
  %v2732 = vmul.f32 %v2645, %v2709
  %v2733 = vmul.f32 %v2647, %v2711
  %v2734 = vmul.f32 %v2649, %v2713
  %v2735 = vmul.f32 %v2651, %v2715
  %v2736 = vmul.f32 %v2653, %v2717
  %v2737 = vmul.f32 %v2655, %v2719
  %v2738 = vmul.f32 %v2657, %v2721
  %v2739 = vmul.f32 %v2659, %v2723
  %2748 = vrot.lane.b32.xlu0 %v2732, 32
  %v2749 = vpop.permute.xlu0 %2748
  %2750 = vrot.lane.b32.xlu0 %v2733, 32
  %v2751 = vpop.permute.xlu0 %2750
  %2752 = vrot.lane.b32.xlu0 %v2734, 32
  %v2753 = vpop.permute.xlu0 %2752
  %2754 = vrot.lane.b32.xlu0 %v2735, 32
  %v2755 = vpop.permute.xlu0 %2754
  %2756 = vrot.lane.b32.xlu0 %v2736, 32
  %v2757 = vpop.permute.xlu0 %2756
  %2758 = vrot.lane.b32.xlu0 %v2737, 32
  %v2759 = vpop.permute.xlu0 %2758
  %2760 = vrot.lane.b32.xlu0 %v2738, 32
  %v2761 = vpop.permute.xlu0 %2760
  %2762 = vrot.lane.b32.xlu0 %v2739, 32
  %v2763 = vpop.permute.xlu0 %2762
  %v2772 = vadd.f32 %v2692, %v2749
  %v2773 = vadd.f32 %v2693, %v2751
  %v2774 = vadd.f32 %v2694, %v2753
  %v2775 = vadd.f32 %v2695, %v2755
  %v2776 = vadd.f32 %v2696, %v2757
  %v2777 = vadd.f32 %v2697, %v2759
  %v2778 = vadd.f32 %v2698, %v2761
  %v2779 = vadd.f32 %v2699, %v2763
  %v2780 = vtanh.pop %v2772
  %v2781 = vtanh.pop %v2773
  %v2782 = vtanh.pop %v2774
  %v2783 = vtanh.pop %v2775
  %v2784 = vtanh.pop %v2776
  %v2785 = vtanh.pop %v2777
  %v2786 = vtanh.pop %v2778
  %v2787 = vtanh.pop %v2779
  %2796 = vrot.lane.b32.xlu0 %v2780, 32
  %v2797 = vpop.permute.xlu0 %2796
  %2798 = vrot.lane.b32.xlu0 %v2781, 32
  %v2799 = vpop.permute.xlu0 %2798
  %2800 = vrot.lane.b32.xlu0 %v2782, 32
  %v2801 = vpop.permute.xlu0 %2800
  %2802 = vrot.lane.b32.xlu0 %v2783, 32
  %v2803 = vpop.permute.xlu0 %2802
  %2804 = vrot.lane.b32.xlu0 %v2784, 32
  %v2805 = vpop.permute.xlu0 %2804
  %2806 = vrot.lane.b32.xlu0 %v2785, 32
  %v2807 = vpop.permute.xlu0 %2806
  %2808 = vrot.lane.b32.xlu0 %v2786, 32
  %v2809 = vpop.permute.xlu0 %2808
  %2810 = vrot.lane.b32.xlu0 %v2787, 32
  %v2811 = vpop.permute.xlu0 %2810
  %v2820 = vmul.f32 %v2645, %v2797
  %v2821 = vmul.f32 %v2647, %v2799
  %v2822 = vmul.f32 %v2649, %v2801
  %v2823 = vmul.f32 %v2651, %v2803
  %v2824 = vmul.f32 %v2653, %v2805
  %v2825 = vmul.f32 %v2655, %v2807
  %v2826 = vmul.f32 %v2657, %v2809
  %v2827 = vmul.f32 %v2659, %v2811
  %v2828 = vld [vmem:[%s4] sm:$0x1]
  %v2830 = vlaneseq
  %v2831 = vshrl.u32 %v2830, 7
  %v2832 = vsub.s32 0, %v2831
  %v2833 = vrot.slane %v2828, %v2832
  %2834 = vrot.lane.b32.xlu0 %v2833, 64
  %v2835 = vpop.permute.xlu0 %2834
  %v2837 = vmul.f32 %v2820, %v2835
  %v2838 = vmul.f32 %v2821, %v2835
  %v2839 = vmul.f32 %v2822, %v2835
  %v2840 = vmul.f32 %v2823, %v2835
  %v2841 = vmul.f32 %v2824, %v2835
  %v2842 = vmul.f32 %v2825, %v2835
  %v2843 = vmul.f32 %v2826, %v2835
  %v2844 = vmul.f32 %v2827, %v2835
  %v2853 = vrot.slane %v2838, 7
  %v2854 = vrot.slane %v2839, 6
  %v2855 = vsel %vm478, %v2854, %v2853
  %v2856 = vrot.slane %v2840, 5
  %v2857 = vsel %vm481, %v2856, %v2855
  %v2858 = vrot.slane %v2841, 4
  %v2859 = vsel %vm484, %v2858, %v2857
  %v2860 = vrot.slane %v2842, 3
  %v2861 = vsel %vm487, %v2860, %v2859
  %v2862 = vrot.slane %v2843, 2
  %v2863 = vsel %vm490, %v2862, %v2861
  %v2864 = vrot.slane %v2844, 1
  %v2865 = vsel %vm493, %v2864, %v2863
  %2866 = vrot.lane.b32.xlu0 %v2837, 64
  %v2867 = vpop.permute.xlu0 %2866
  %2868 = vrot.lane.b32.xlu0 %v2865, 64
  %v2869 = vpop.permute.xlu0 %2868
  %vm2872 = vcmask 261127
  %v2873 = vsel %vm2872, %v2867, 0.0
  %2874 = vadd.xlane.f32.xlu0 %v2873
  %v2875 = vpop.xlane.xlu0 %2874
  %vm2876 = vcmask 260096
  %v2877 = vsel %vm2876, %v2869, 0.0
  %2878 = vadd.xlane.f32.xlu0 %v2877
  %v2879 = vpop.xlane.xlu0 %2878
  %v2880 = vld [vmem:[#allocation2] sm:$0x1]
  %v2882 = vlaneseq
  %v2883 = vshrl.u32 %v2882, 7
  %v2884 = vsub.s32 0, %v2883
  %v2885 = vrot.slane %v2880, %v2884
  %v2887 = vadd.f32 %v2875, %v2885
  %v2888 = vadd.f32 %v2879, %v2885
  %vm2889 = vcmask 7175
  %2890 = vst.msk [vmem:[%s6 - $0x7] sm:$0x80] %vm2889, %v2887
  %vm2891 = vcmask 6144
  %2892 = vst.msk [vmem:[%s6 + $0x1] sm:$0x7f] %vm2891, %v2888
  // Predicated region
  $region26: #{tpu_custom_call.1} parent=0 // pred_check
    _
  $region27: #{tpu_custom_call.1} parent=0 // pred_check_branch
    %2894 = sbr.rel (0) target = $region29
  $region28: #{tpu_custom_call.1} parent=0 // pred_region
    _
  $region29: #{tpu_custom_call.1} parent=0 // pred_fallthru
    _
  // Predicated region
  $region30: #{tpu_custom_call.1} parent=0 // pred_check
    _
  $region31: #{tpu_custom_call.1} parent=0 // pred_check_branch
    %2896 = sbr.rel (0) target = $region33
  $region32: #{tpu_custom_call.1} parent=0 // pred_region
    _
  $region33: #{tpu_custom_call.1} parent=0 // pred_fallthru
    _

</llo_original>
